<compile_context>
chip_gen: v5e
topology: v5e:2x2
jax: 0.10.0
libtpu: 0.0.40
codegen_flags: <defaults>
</compile_context>

<pallas_src>
import numpy as np
import jax
import jax.numpy as jnp
from jax.experimental import pallas as pl
from jax.experimental.pallas import tpu as pltpu

K = 7               # conv kernel size
P = (K - 1) // 2    # "same" padding


def spatial_attention_kernel(m_ref, x_ref, o_ref):
    # m_ref: VMEM (2, HW, HW) f32 — conv-as-matmul operator (grid-resident)
    # x_ref: VMEM (Nb, C, HW)     — lane-dense input block
    # o_ref: VMEM (Nb, C, HW)     — lane-dense output block
    x = x_ref[...]                               # native dtype
    xf = x.astype(jnp.float32)
    avg = jnp.mean(xf, axis=1)                   # (Nb, HW) channel mean
    mx = jnp.max(xf, axis=1)                     # (Nb, HW) channel max

    # 7x7 zero-padded conv of concat([avg, max]) == avg @ M[0] + max @ M[1]
    logits = jnp.dot(avg, m_ref[0],
                     preferred_element_type=jnp.float32,
                     precision=jax.lax.Precision.HIGHEST)
    logits = logits + jnp.dot(mx, m_ref[1],
                              preferred_element_type=jnp.float32,
                              precision=jax.lax.Precision.HIGHEST)
    att = jax.nn.sigmoid(logits)                 # (Nb, HW)

    # Broadcast over channels; multiply + store stay lane-dense, native dtype.
    o_ref[...] = (x * att[:, None, :].astype(x.dtype)).astype(o_ref.dtype)


def _conv_as_matmul_operator(w, H, W):
    """Fold the 2->1 channel, KxK, zero-padded conv into M: (2, H*W, H*W) f32
    such that conv(concat([a, b]))[y, x] == (a_flat @ M[0] + b_flat @ M[1])[y*W + x]."""
    HW = H * W
    cs, rows, cols, widx = [], [], [], []
    for c in range(2):
        for y in range(H):
            for x in range(W):
                out_idx = y * W + x
                for dy in range(K):
                    for dx in range(K):
                        sy, sx = y + dy - P, x + dx - P
                        if 0 <= sy < H and 0 <= sx < W:
                            cs.append(c)
                            rows.append(sy * W + sx)
                            cols.append(out_idx)
                            widx.append((c * K + dy) * K + dx)
    cs = np.asarray(cs)
    rows = np.asarray(rows)
    cols = np.asarray(cols)
    widx = np.asarray(widx)
    vals = w.reshape(-1).astype(jnp.float32)[widx]
    return jnp.zeros((2, HW, HW), jnp.float32).at[cs, rows, cols].set(vals)


def spatial_attention(x, w):
    """x: (N, C, H, W); w: (1, 2, K, K) conv weight (OIHW, no bias)."""
    N, C, H, W = x.shape
    HW = H * W
    m = _conv_as_matmul_operator(w, H, W)        # (2, HW, HW) f32
    x_flat = x.reshape(N, C, HW)                 # lane-dense presentation (free)

    # Largest batch tile whose double-buffered in+out blocks plus the resident
    # conv operator stay comfortably inside scoped VMEM (safe for v7x 64 MiB).
    itemsize = np.dtype(x.dtype).itemsize
    budget = 8 * 1024 * 1024
    m_bytes = 2 * HW * HW * 4
    nb = 1
    for d in range(1, N + 1):
        if N % d == 0 and 4 * d * C * HW * itemsize + m_bytes <= budget:
            nb = d

    out_flat = pl.pallas_call(
        spatial_attention_kernel,
        out_shape=jax.ShapeDtypeStruct((N, C, HW), x.dtype),
        grid_spec=pltpu.PrefetchScalarGridSpec(
            num_scalar_prefetch=0,
            grid=(N // nb,),
            in_specs=[
                pl.BlockSpec((2, HW, HW), lambda n: (0, 0, 0)),   # conv operator
                pl.BlockSpec((nb, C, HW), lambda n: (n, 0, 0)),   # x
            ],
            out_specs=pl.BlockSpec((nb, C, HW), lambda n: (n, 0, 0)),
        ),
        compiler_params=pltpu.CompilerParams(
            dimension_semantics=("parallel",),
        ),
    )(m, x_flat)
    return out_flat.reshape(N, C, H, W)


def ref_spatial_attention(x, w):
    """Pure-JAX reference matching the PyTorch forward."""
    avg = jnp.mean(x, axis=1, keepdims=True)
    mx = jnp.max(x, axis=1, keepdims=True)
    sa = jnp.concatenate([avg, mx], axis=1)
    conv = jax.lax.conv_general_dilated(
        sa, w, window_strides=(1, 1), padding=((P, P), (P, P)),
        dimension_numbers=("NCHW", "OIHW", "NCHW"),
        precision=jax.lax.Precision.HIGHEST)
    return x * jax.nn.sigmoid(conv)


if __name__ == "__main__":
    key = jax.random.PRNGKey(0)
    kx, kw = jax.random.split(key)

    N, C, H, W = 2, 4, 16, 16
    x = jax.random.normal(kx, (N, C, H, W), dtype=jnp.float32)

    # Deterministic conv weight init (PyTorch-default-style uniform bound).
    fan_in = 2 * K * K
    bound = 1.0 / (fan_in ** 0.5)
    w = jax.random.uniform(kw, (1, 2, K, K), jnp.float32, -bound, bound)

    out = spatial_attention(x, w)
    jax.block_until_ready(out)

    ref = ref_spatial_attention(x, w)
    err = float(jnp.max(jnp.abs(out - ref)))
    assert jnp.allclose(out, ref, atol=2e-5, rtol=2e-5), f"max abs err {err}"

    print("KERNEL_OK")
</pallas_src>

<mosaic_0001>
module attributes {stable_mosaic.version = 11 : i64} {
  func.func @spatial_attention_kernel(%arg0: i32, %arg1: memref<2x256x256xf32, #tpu.memory_space<vmem>>, %arg2: memref<2x4x256xf32, #tpu.memory_space<vmem>>, %arg3: memref<2x4x256xf32, #tpu.memory_space<vmem>>) attributes {dimension_semantics = [#tpu.dimension_semantics<parallel>], iteration_bounds = array<i64: 1>, scalar_prefetch = 0 : i64, scratch_operands = 0 : i64, tpu.core_type = #tpu.core_type<tc>, window_params = [{pipeline_mode = #tpu.pipeline_mode<synchronous>, transform_indices = @transform_0, window_bounds = array<i64: 2, 256, 256>}, {transform_indices = @transform_1, window_bounds = array<i64: 2, 4, 256>}, {transform_indices = @transform_2, window_bounds = array<i64: 2, 4, 256>}]} {
    %c0 = arith.constant 0 : index
    %c0_0 = arith.constant 0 : index
    %c0_1 = arith.constant 0 : index
    %0 = vector.load %arg2[%c0, %c0_0, %c0_1] : memref<2x4x256xf32, #tpu.memory_space<vmem>>, vector<2x4x256xf32>
    %cst = arith.constant dense<0.000000e+00> : vector<2x256xf32>
    %1 = vector.multi_reduction <add>, %0, %cst [1] : vector<2x4x256xf32> to vector<2x256xf32>
    %cst_2 = arith.constant 4.000000e+00 : f32
    %2 = vector.broadcast %cst_2 : f32 to vector<2x256xf32>
    %3 = arith.divf %1, %2 : vector<2x256xf32>
    %cst_3 = arith.constant dense<0xFF800000> : vector<2x256xf32>
    %4 = vector.multi_reduction <maximumf>, %0, %cst_3 [1] : vector<2x4x256xf32> to vector<2x256xf32>
    %c0_4 = arith.constant 0 : index
    %c0_5 = arith.constant 0 : index
    %c0_6 = arith.constant 0 : index
    %5 = vector.load %arg1[%c0_4, %c0_5, %c0_6] : memref<2x256x256xf32, #tpu.memory_space<vmem>>, vector<1x256x256xf32>
    %6 = vector.shape_cast %5 : vector<1x256x256xf32> to vector<256x256xf32>
    %cst_7 = arith.constant dense<0.000000e+00> : vector<2x256xf32>
    %7 = tpu.matmul %3, %6, %cst_7 {dimension_numbers = #tpu.dot_dimension_numbers<[1], [0], [0], [1], [0, 0, 1, 1], [], []>, precision = #tpu.contract_precision<fp32>} : vector<2x256xf32>, vector<256x256xf32>, vector<2x256xf32> -> vector<2x256xf32>
    %c1 = arith.constant 1 : index
    %c0_8 = arith.constant 0 : index
    %c0_9 = arith.constant 0 : index
    %8 = vector.load %arg1[%c1, %c0_8, %c0_9] : memref<2x256x256xf32, #tpu.memory_space<vmem>>, vector<1x256x256xf32>
    %9 = vector.shape_cast %8 : vector<1x256x256xf32> to vector<256x256xf32>
    %cst_10 = arith.constant dense<0.000000e+00> : vector<2x256xf32>
    %10 = tpu.matmul %4, %9, %cst_10 {dimension_numbers = #tpu.dot_dimension_numbers<[1], [0], [0], [1], [0, 0, 1, 1], [], []>, precision = #tpu.contract_precision<fp32>} : vector<2x256xf32>, vector<256x256xf32>, vector<2x256xf32> -> vector<2x256xf32>
    %11 = arith.addf %7, %10 : vector<2x256xf32>
    %12 = arith.negf %11 : vector<2x256xf32>
    %13 = math.exp %12 : vector<2x256xf32>
    %cst_11 = arith.constant 1.000000e+00 : f32
    %14 = vector.broadcast %cst_11 : f32 to vector<2x256xf32>
    %15 = arith.addf %14, %13 : vector<2x256xf32>
    %16 = arith.divf %14, %15 : vector<2x256xf32>
    %17 = vector.shape_cast %16 : vector<2x256xf32> to vector<2x1x256xf32>
    %18 = vector.broadcast %17 : vector<2x1x256xf32> to vector<2x4x256xf32>
    %19 = arith.mulf %0, %18 : vector<2x4x256xf32>
    %c0_12 = arith.constant 0 : index
    %c0_13 = arith.constant 0 : index
    %c0_14 = arith.constant 0 : index
    %20 = vector.load %arg3[%c0_12, %c0_13, %c0_14] : memref<2x4x256xf32, #tpu.memory_space<vmem>>, vector<2x4x256xf32>
    tpu.vector_store %arg3[%c0_12, %c0_13, %c0_14], %19 {strides = array<i32>} : memref<2x4x256xf32, #tpu.memory_space<vmem>>, vector<2x4x256xf32>,
    return
  }
  func.func @transform_0(%arg0: i32) -> (i32, i32, i32) {
    %c0_i32 = arith.constant 0 : i32
    %c0_i32_0 = arith.constant 0 : i32
    %c0_i32_1 = arith.constant 0 : i32
    %c0_i32_2 = arith.constant 0 : i32
    return %c0_i32, %c0_i32_0, %c0_i32_1 : i32, i32, i32
  }
  func.func @transform_1(%arg0: i32) -> (i32, i32, i32) {
    %c0_i32 = arith.constant 0 : i32
    %c0_i32_0 = arith.constant 0 : i32
    %c0_i32_1 = arith.constant 0 : i32
    return %arg0, %c0_i32, %c0_i32_0 : i32, i32, i32
  }
  func.func @transform_2(%arg0: i32) -> (i32, i32, i32) {
    %c0_i32 = arith.constant 0 : i32
    %c0_i32_0 = arith.constant 0 : i32
    %c0_i32_1 = arith.constant 0 : i32
    return %arg0, %c0_i32, %c0_i32_0 : i32, i32, i32
  }
}

</mosaic_0001>

<llo_original>
// kernel: tpu_custom_call.1
$region0: #{tpu_custom_call.1}
  #allocation0 [shape = 'u32[]', space=smem, size = 0x4, offset = 0x4, fixed_abs, tag = 'smem constant byte address 0x4 - core index']
  #allocation1 [shape = 'u32[72,128]{1,0:T(1,128)}', space=vmem, size = 0x9000, scoped, tag = 'internal scratch']
  %s0 = inlined_call_operand.hbm [shape: f32[2,256,256], index: 0, kind: input, shape index: {}]
  %s1 = inlined_call_operand.hbm [shape: f32[2,4,256], index: 1, kind: input, shape index: {}]
  %s2 = inlined_call_operand.hbm [shape: f32[2,4,256], index: 2, kind: output, shape index: {}]
  %s3 = sld [smem:[#allocation0]]
  $region26: #{tpu_custom_call.1} parent=0
    _
  %s5 = ssub.s32 1, %s3
  %s6 = scalar_select 0, %s5, %s3
  $region1: #{tpu_custom_call.1} parent=0
    #allocation2 [shape = 'u8[524288]{0}', space=vmem, size = 0x80000, scoped, tag = 'input window, operand 0, single buffered']
    #allocation3 [shape = 's32[1]{0}', space=sflag, size = 0x4, scoped, tag = 'scoped memory for tpu_custom_call.1']
    #allocation4 [shape = 's32[1]{0}', space=sflag, size = 0x4, scoped, tag = 'scoped memory for tpu_custom_call.1']
    #allocation5 [shape = 'u8[8192]{0}', space=vmem, size = 0x2000, scoped, tag = 'input window, operand 1, single buffered']
    #allocation6 [shape = 's32[1]{0}', space=sflag, size = 0x4, scoped, tag = 'scoped memory for tpu_custom_call.1']
    #allocation7 [shape = 'u8[8192]{0}', space=vmem, size = 0x2000, scoped, tag = 'output window, operand 0, single buffered']
    %7 = vsyncpa [#allocation3], 0
    %8 = vsyncpa [#allocation6], 0
    %9 = vsyncpa [#allocation4], 0
    // Predicated region
    $region2: #{tpu_custom_call.1} parent=1 // pred_check
      _
    $region3: #{tpu_custom_call.1} parent=1 // pred_check_branch
      %11 = sbr.rel (0) target = $region5
    $region4: #{tpu_custom_call.1} parent=1 // pred_region
      %13 = vsyncadd [#allocation3], 0
      %s14 = sshll.u32 %s0, 4
      %s15 = int_to_ptr.hbm [resolvable:$true] %s14
      %s16 = sshll.u32 [#allocation2], 4
      %s17 = int_to_ptr.vmem [resolvable:$true] %s16
      %22 = dma.hbm_to_vmem [thread:$0]  %s15, 16384, %s17, [#allocation3], 256, 256, 16
    $region5: #{tpu_custom_call.1} parent=1 // pred_fallthru
      _
    // Predicated region
    $region6: #{tpu_custom_call.1} parent=1 // pred_check
      _
    $region7: #{tpu_custom_call.1} parent=1 // pred_check_branch
      %24 = sbr.rel (0) target = $region9
    $region8: #{tpu_custom_call.1} parent=1 // pred_region
      %26 = vsyncadd [#allocation6], 0
      %s27 = sshll.u32 %s1, 4
      %s28 = int_to_ptr.hbm [resolvable:$true] %s27
      %s29 = sshll.u32 [#allocation5], 4
      %s30 = int_to_ptr.vmem [resolvable:$true] %s29
      %35 = dma.hbm_to_vmem [thread:$0]  %s28, 256, %s30, [#allocation6], 128, 128, 8
    $region9: #{tpu_custom_call.1} parent=1 // pred_fallthru
      _
    // Predicated region
    $region10: #{tpu_custom_call.1} parent=1 // pred_check
      _
    $region11: #{tpu_custom_call.1} parent=1 // pred_check_branch
      %37 = sbr.rel (0) target = $region13
    $region12: #{tpu_custom_call.1} parent=1 // pred_region
      %39 = dma.done [#allocation3], 16384
    $region13: #{tpu_custom_call.1} parent=1 // pred_fallthru
      _
    // Predicated region
    $region14: #{tpu_custom_call.1} parent=1 // pred_check
      _
    $region15: #{tpu_custom_call.1} parent=1 // pred_check_branch
      %41 = sbr.rel (0) target = $region17
    $region16: #{tpu_custom_call.1} parent=1 // pred_region
      %43 = dma.done [#allocation6], 256
    $region17: #{tpu_custom_call.1} parent=1 // pred_fallthru
      _
    %v44 = vld [vmem:[#allocation5] sm:$0xff]
    %v45 = vld [vmem:[#allocation5 + $0x8] sm:$0xff]
    %48 = vst [vmem:[#allocation1] ss:$2 sm:$0xff] %v44
    %v49 = vld.sshfl [vmem:[#allocation1] sm:$0xff pattern:$0x75316420]
    %v50 = vld.sshfl [vmem:[#allocation1 + $0x8] sm:$0xff pattern:$0x75316420]
    %s51 = scalar_lea.vmem [#allocation1], 16
    %52 = vst [vmem:[%s51] ss:$2 sm:$0xff] %v45
    %v53 = vld.sshfl [vmem:[#allocation1 + $0x10] sm:$0xff pattern:$0x75316420]
    %v54 = vld.sshfl [vmem:[#allocation1 + $0x18] sm:$0xff pattern:$0x75316420]
    %vm59 = vcmask 1043456
    %v60 = vsel %vm59, %v49, 0.0
    %v61 = vrot.slane %v60, 4
    %v62 = vadd.f32 %v60, %v61
    %v63 = vrot.slane %v62, 2
    %v64 = vadd.f32 %v62, %v63
    %v65 = vrot.slane %v64, 1
    %v66 = vadd.f32 %v64, %v65
    %v67 = vsel %vm59, %v50, 0.0
    %v68 = vrot.slane %v67, 4
    %v69 = vadd.f32 %v67, %v68
    %v70 = vrot.slane %v69, 2
    %v71 = vadd.f32 %v69, %v70
    %v72 = vrot.slane %v71, 1
    %v73 = vadd.f32 %v71, %v72
    %v74 = vsel %vm59, %v53, 0.0
    %v75 = vrot.slane %v74, 4
    %v76 = vadd.f32 %v74, %v75
    %v77 = vrot.slane %v76, 2
    %v78 = vadd.f32 %v76, %v77
    %v79 = vrot.slane %v78, 1
    %v80 = vadd.f32 %v78, %v79
    %v81 = vsel %vm59, %v54, 0.0
    %v82 = vrot.slane %v81, 4
    %v83 = vadd.f32 %v81, %v82
    %v84 = vrot.slane %v83, 2
    %v85 = vadd.f32 %v83, %v84
    %v86 = vrot.slane %v85, 1
    %v87 = vadd.f32 %v85, %v86
    %v88 = vrcp.pop 4.0
    %v89 = vmul.f32 4.0, %v88
    %v90 = vsub.f32 1.0, %v89
    %v91 = vmul.f32 %v88, %v90
    %v92 = vadd.f32 %v88, %v91
    %vm93 = vweird.f32 %v88
    %v94 = vsel %vm93, %v88, %v92
    %v95 = vmul.f32 %v66, %v94
    %v96 = vmul.f32 %v73, %v94
    %v97 = vmul.f32 %v80, %v94
    %v98 = vmul.f32 %v87, %v94
    %99 = vst [vmem:[#allocation1] ss:$2 sm:$0xff] %v44
    %v100 = vld.sshfl [vmem:[#allocation1] sm:$0xff pattern:$0x75316420]
    %v101 = vld.sshfl [vmem:[#allocation1 + $0x8] sm:$0xff pattern:$0x75316420]
    %s102 = scalar_lea.vmem [#allocation1], 16
    %103 = vst [vmem:[%s102] ss:$2 sm:$0xff] %v45
    %v104 = vld.sshfl [vmem:[#allocation1 + $0x10] sm:$0xff pattern:$0x75316420]
    %v105 = vld.sshfl [vmem:[#allocation1 + $0x18] sm:$0xff pattern:$0x75316420]
    %v110 = vsel %vm59, %v100, -inf
    %v111 = vrot.slane %v110, 4
    %v112 = vmax.f32 %v110, %v111
    %v113 = vrot.slane %v112, 2
    %v114 = vmax.f32 %v112, %v113
    %v115 = vrot.slane %v114, 1
    %v116 = vmax.f32 %v114, %v115
    %v117 = vsel %vm59, %v101, -inf
    %v118 = vrot.slane %v117, 4
    %v119 = vmax.f32 %v117, %v118
    %v120 = vrot.slane %v119, 2
    %v121 = vmax.f32 %v119, %v120
    %v122 = vrot.slane %v121, 1
    %v123 = vmax.f32 %v121, %v122
    %v124 = vsel %vm59, %v104, -inf
    %v125 = vrot.slane %v124, 4
    %v126 = vmax.f32 %v124, %v125
    %v127 = vrot.slane %v126, 2
    %v128 = vmax.f32 %v126, %v127
    %v129 = vrot.slane %v128, 1
    %v130 = vmax.f32 %v128, %v129
    %v131 = vsel %vm59, %v105, -inf
    %v132 = vrot.slane %v131, 4
    %v133 = vmax.f32 %v131, %v132
    %v134 = vrot.slane %v133, 2
    %v135 = vmax.f32 %v133, %v134
    %v136 = vrot.slane %v135, 1
    %v137 = vmax.f32 %v135, %v136
    %v138 = vld [vmem:[#allocation2] sm:$0xff]
    %v139 = vld [vmem:[#allocation2 + $0x8] sm:$0xff]
    %v140 = vld [vmem:[#allocation2 + $0x10] sm:$0xff]
    %v141 = vld [vmem:[#allocation2 + $0x18] sm:$0xff]
    %v142 = vld [vmem:[#allocation2 + $0x20] sm:$0xff]
    %v143 = vld [vmem:[#allocation2 + $0x28] sm:$0xff]
    %v144 = vld [vmem:[#allocation2 + $0x30] sm:$0xff]
    %v145 = vld [vmem:[#allocation2 + $0x38] sm:$0xff]
    %v146 = vld [vmem:[#allocation2 + $0x40] sm:$0xff]
    %v147 = vld [vmem:[#allocation2 + $0x48] sm:$0xff]
    %v148 = vld [vmem:[#allocation2 + $0x50] sm:$0xff]
    %v149 = vld [vmem:[#allocation2 + $0x58] sm:$0xff]
    %v150 = vld [vmem:[#allocation2 + $0x60] sm:$0xff]
    %v151 = vld [vmem:[#allocation2 + $0x68] sm:$0xff]
    %v152 = vld [vmem:[#allocation2 + $0x70] sm:$0xff]
    %v153 = vld [vmem:[#allocation2 + $0x78] sm:$0xff]
    %v154 = vld [vmem:[#allocation2 + $0x80] sm:$0xff]
    %v155 = vld [vmem:[#allocation2 + $0x88] sm:$0xff]
    %v156 = vld [vmem:[#allocation2 + $0x90] sm:$0xff]
    %v157 = vld [vmem:[#allocation2 + $0x98] sm:$0xff]
    %v158 = vld [vmem:[#allocation2 + $0xa0] sm:$0xff]
    %v159 = vld [vmem:[#allocation2 + $0xa8] sm:$0xff]
    %v160 = vld [vmem:[#allocation2 + $0xb0] sm:$0xff]
    %v161 = vld [vmem:[#allocation2 + $0xb8] sm:$0xff]
    %v162 = vld [vmem:[#allocation2 + $0xc0] sm:$0xff]
    %v163 = vld [vmem:[#allocation2 + $0xc8] sm:$0xff]
    %v164 = vld [vmem:[#allocation2 + $0xd0] sm:$0xff]
    %v165 = vld [vmem:[#allocation2 + $0xd8] sm:$0xff]
    %v166 = vld [vmem:[#allocation2 + $0xe0] sm:$0xff]
    %v167 = vld [vmem:[#allocation2 + $0xe8] sm:$0xff]
    %v168 = vld [vmem:[#allocation2 + $0xf0] sm:$0xff]
    %v169 = vld [vmem:[#allocation2 + $0xf8] sm:$0xff]
    %v170 = vld [vmem:[#allocation2 + $0x100] sm:$0xff]
    %v171 = vld [vmem:[#allocation2 + $0x108] sm:$0xff]
    %v172 = vld [vmem:[#allocation2 + $0x110] sm:$0xff]
    %v173 = vld [vmem:[#allocation2 + $0x118] sm:$0xff]
    %v174 = vld [vmem:[#allocation2 + $0x120] sm:$0xff]
    %v175 = vld [vmem:[#allocation2 + $0x128] sm:$0xff]
    %v176 = vld [vmem:[#allocation2 + $0x130] sm:$0xff]
    %v177 = vld [vmem:[#allocation2 + $0x138] sm:$0xff]
    %v178 = vld [vmem:[#allocation2 + $0x140] sm:$0xff]
    %v179 = vld [vmem:[#allocation2 + $0x148] sm:$0xff]
    %v180 = vld [vmem:[#allocation2 + $0x150] sm:$0xff]
    %v181 = vld [vmem:[#allocation2 + $0x158] sm:$0xff]
    %v182 = vld [vmem:[#allocation2 + $0x160] sm:$0xff]
    %v183 = vld [vmem:[#allocation2 + $0x168] sm:$0xff]
    %v184 = vld [vmem:[#allocation2 + $0x170] sm:$0xff]
    %v185 = vld [vmem:[#allocation2 + $0x178] sm:$0xff]
    %v186 = vld [vmem:[#allocation2 + $0x180] sm:$0xff]
    %v187 = vld [vmem:[#allocation2 + $0x188] sm:$0xff]
    %v188 = vld [vmem:[#allocation2 + $0x190] sm:$0xff]
    %v189 = vld [vmem:[#allocation2 + $0x198] sm:$0xff]
    %v190 = vld [vmem:[#allocation2 + $0x1a0] sm:$0xff]
    %v191 = vld [vmem:[#allocation2 + $0x1a8] sm:$0xff]
    %v192 = vld [vmem:[#allocation2 + $0x1b0] sm:$0xff]
    %v193 = vld [vmem:[#allocation2 + $0x1b8] sm:$0xff]
    %v194 = vld [vmem:[#allocation2 + $0x1c0] sm:$0xff]
    %v195 = vld [vmem:[#allocation2 + $0x1c8] sm:$0xff]
    %v196 = vld [vmem:[#allocation2 + $0x1d0] sm:$0xff]
    %v197 = vld [vmem:[#allocation2 + $0x1d8] sm:$0xff]
    %v198 = vld [vmem:[#allocation2 + $0x1e0] sm:$0xff]
    %v199 = vld [vmem:[#allocation2 + $0x1e8] sm:$0xff]
    %v200 = vld [vmem:[#allocation2 + $0x1f0] sm:$0xff]
    %v201 = vld [vmem:[#allocation2 + $0x1f8] sm:$0xff]
    %s202 = scalar_lea.vmem [#allocation2], 512
    %v203 = vld [vmem:[%s202] sm:$0xff]
    %v204 = vld [vmem:[%s202 + $0x8] sm:$0xff]
    %v205 = vld [vmem:[%s202 + $0x10] sm:$0xff]
    %v206 = vld [vmem:[%s202 + $0x18] sm:$0xff]
    %v207 = vld [vmem:[%s202 + $0x20] sm:$0xff]
    %v208 = vld [vmem:[%s202 + $0x28] sm:$0xff]
    %v209 = vld [vmem:[%s202 + $0x30] sm:$0xff]
    %v210 = vld [vmem:[%s202 + $0x38] sm:$0xff]
    %v211 = vld [vmem:[%s202 + $0x40] sm:$0xff]
    %v212 = vld [vmem:[%s202 + $0x48] sm:$0xff]
    %v213 = vld [vmem:[%s202 + $0x50] sm:$0xff]
    %v214 = vld [vmem:[%s202 + $0x58] sm:$0xff]
    %v215 = vld [vmem:[%s202 + $0x60] sm:$0xff]
    %v216 = vld [vmem:[%s202 + $0x68] sm:$0xff]
    %v217 = vld [vmem:[%s202 + $0x70] sm:$0xff]
    %v218 = vld [vmem:[%s202 + $0x78] sm:$0xff]
    %v219 = vld [vmem:[%s202 + $0x80] sm:$0xff]
    %v220 = vld [vmem:[%s202 + $0x88] sm:$0xff]
    %v221 = vld [vmem:[%s202 + $0x90] sm:$0xff]
    %v222 = vld [vmem:[%s202 + $0x98] sm:$0xff]
    %v223 = vld [vmem:[%s202 + $0xa0] sm:$0xff]
    %v224 = vld [vmem:[%s202 + $0xa8] sm:$0xff]
    %v225 = vld [vmem:[%s202 + $0xb0] sm:$0xff]
    %v226 = vld [vmem:[%s202 + $0xb8] sm:$0xff]
    %v227 = vld [vmem:[%s202 + $0xc0] sm:$0xff]
    %v228 = vld [vmem:[%s202 + $0xc8] sm:$0xff]
    %v229 = vld [vmem:[%s202 + $0xd0] sm:$0xff]
    %v230 = vld [vmem:[%s202 + $0xd8] sm:$0xff]
    %v231 = vld [vmem:[%s202 + $0xe0] sm:$0xff]
    %v232 = vld [vmem:[%s202 + $0xe8] sm:$0xff]
    %v233 = vld [vmem:[%s202 + $0xf0] sm:$0xff]
    %v234 = vld [vmem:[%s202 + $0xf8] sm:$0xff]
    %v235 = vld [vmem:[%s202 + $0x100] sm:$0xff]
    %v236 = vld [vmem:[%s202 + $0x108] sm:$0xff]
    %v237 = vld [vmem:[%s202 + $0x110] sm:$0xff]
    %v238 = vld [vmem:[%s202 + $0x118] sm:$0xff]
    %v239 = vld [vmem:[%s202 + $0x120] sm:$0xff]
    %v240 = vld [vmem:[%s202 + $0x128] sm:$0xff]
    %v241 = vld [vmem:[%s202 + $0x130] sm:$0xff]
    %v242 = vld [vmem:[%s202 + $0x138] sm:$0xff]
    %v243 = vld [vmem:[%s202 + $0x140] sm:$0xff]
    %v244 = vld [vmem:[%s202 + $0x148] sm:$0xff]
    %v245 = vld [vmem:[%s202 + $0x150] sm:$0xff]
    %v246 = vld [vmem:[%s202 + $0x158] sm:$0xff]
    %v247 = vld [vmem:[%s202 + $0x160] sm:$0xff]
    %v248 = vld [vmem:[%s202 + $0x168] sm:$0xff]
    %v249 = vld [vmem:[%s202 + $0x170] sm:$0xff]
    %v250 = vld [vmem:[%s202 + $0x178] sm:$0xff]
    %v251 = vld [vmem:[%s202 + $0x180] sm:$0xff]
    %v252 = vld [vmem:[%s202 + $0x188] sm:$0xff]
    %v253 = vld [vmem:[%s202 + $0x190] sm:$0xff]
    %v254 = vld [vmem:[%s202 + $0x198] sm:$0xff]
    %v255 = vld [vmem:[%s202 + $0x1a0] sm:$0xff]
    %v256 = vld [vmem:[%s202 + $0x1a8] sm:$0xff]
    %v257 = vld [vmem:[%s202 + $0x1b0] sm:$0xff]
    %v258 = vld [vmem:[%s202 + $0x1b8] sm:$0xff]
    %v259 = vld [vmem:[%s202 + $0x1c0] sm:$0xff]
    %v260 = vld [vmem:[%s202 + $0x1c8] sm:$0xff]
    %v261 = vld [vmem:[%s202 + $0x1d0] sm:$0xff]
    %v262 = vld [vmem:[%s202 + $0x1d8] sm:$0xff]
    %v263 = vld [vmem:[%s202 + $0x1e0] sm:$0xff]
    %v264 = vld [vmem:[%s202 + $0x1e8] sm:$0xff]
    %v265 = vld [vmem:[%s202 + $0x1f0] sm:$0xff]
    %v266 = vld [vmem:[%s202 + $0x1f8] sm:$0xff]
    %vm271 = vcmask 1041409
    %v272 = vsel %vm271, %v130, %v116
    %v273 = vsel %vm271, %v137, %v123
    %v276 = vand.u32 %v233, 4294901760
    %277 = vmatpush.msra.mxu0 %v276
    %v278 = vand.u32 %v231, 4294901760
    %279 = vmatpush.msra.mxu0 %v278
    %v280 = vand.u32 %v229, 4294901760
    %281 = vmatpush.msra.mxu0 %v280
    %v282 = vand.u32 %v227, 4294901760
    %283 = vmatpush.msra.mxu0 %v282
    %v284 = vand.u32 %v225, 4294901760
    %285 = vmatpush.msra.mxu0 %v284
    %v286 = vand.u32 %v223, 4294901760
    %287 = vmatpush.msra.mxu0 %v286
    %v288 = vand.u32 %v221, 4294901760
    %289 = vmatpush.msra.mxu0 %v288
    %v290 = vand.u32 %v219, 4294901760
    %291 = vmatpush.msra.mxu0 %v290
    %v292 = vand.u32 %v217, 4294901760
    %293 = vmatpush.msra.mxu0 %v292
    %v294 = vand.u32 %v215, 4294901760
    %295 = vmatpush.msra.mxu0 %v294
    %v296 = vand.u32 %v213, 4294901760
    %297 = vmatpush.msra.mxu0 %v296
    %v298 = vand.u32 %v211, 4294901760
    %299 = vmatpush.msra.mxu0 %v298
    %v300 = vand.u32 %v209, 4294901760
    %301 = vmatpush.msra.mxu0 %v300
    %v302 = vand.u32 %v207, 4294901760
    %303 = vmatpush.msra.mxu0 %v302
    %v304 = vand.u32 %v205, 4294901760
    %305 = vmatpush.msra.mxu0 %v304
    %v306 = vand.u32 %v203, 4294901760
    %307 = vmatpush.msra.mxu0 %v306
    %v308 = vand.u32 %v272, 4294901760
    %v309 = vsub.f32 %v272, %v308
    %v310 = vand.u32 %v309, 4294901760
    %v311 = vsub.f32 %v309, %v310
    %v312 = vand.u32 %v311, 4294901760
    %313 = vmatmul.f32.gmra.mxu0 %v312
    %v314 = vpop.f32.mrf.mxu0
    %v315 = vadd.f32 0.0, %v314
    %316 = vdwg.mxu0
    %v317 = vand.u32 %v233, 4294901760
    %v318 = vsub.f32 %v233, %v317
    %v319 = vand.u32 %v318, 4294901760
    %v320 = vsub.f32 %v318, %v319
    %v321 = vand.u32 %v320, 4294901760
    %322 = vmatpush.msra.mxu0 %v321
    %v323 = vand.u32 %v231, 4294901760
    %v324 = vsub.f32 %v231, %v323
    %v325 = vand.u32 %v324, 4294901760
    %v326 = vsub.f32 %v324, %v325
    %v327 = vand.u32 %v326, 4294901760
    %328 = vmatpush.msra.mxu0 %v327
    %v329 = vand.u32 %v229, 4294901760
    %v330 = vsub.f32 %v229, %v329
    %v331 = vand.u32 %v330, 4294901760
    %v332 = vsub.f32 %v330, %v331
    %v333 = vand.u32 %v332, 4294901760
    %334 = vmatpush.msra.mxu0 %v333
    %v335 = vand.u32 %v227, 4294901760
    %v336 = vsub.f32 %v227, %v335
    %v337 = vand.u32 %v336, 4294901760
    %v338 = vsub.f32 %v336, %v337
    %v339 = vand.u32 %v338, 4294901760
    %340 = vmatpush.msra.mxu0 %v339
    %v341 = vand.u32 %v225, 4294901760
    %v342 = vsub.f32 %v225, %v341
    %v343 = vand.u32 %v342, 4294901760
    %v344 = vsub.f32 %v342, %v343
    %v345 = vand.u32 %v344, 4294901760
    %346 = vmatpush.msra.mxu0 %v345
    %v347 = vand.u32 %v223, 4294901760
    %v348 = vsub.f32 %v223, %v347
    %v349 = vand.u32 %v348, 4294901760
    %v350 = vsub.f32 %v348, %v349
    %v351 = vand.u32 %v350, 4294901760
    %352 = vmatpush.msra.mxu0 %v351
    %v353 = vand.u32 %v221, 4294901760
    %v354 = vsub.f32 %v221, %v353
    %v355 = vand.u32 %v354, 4294901760
    %v356 = vsub.f32 %v354, %v355
    %v357 = vand.u32 %v356, 4294901760
    %358 = vmatpush.msra.mxu0 %v357
    %v359 = vand.u32 %v219, 4294901760
    %v360 = vsub.f32 %v219, %v359
    %v361 = vand.u32 %v360, 4294901760
    %v362 = vsub.f32 %v360, %v361
    %v363 = vand.u32 %v362, 4294901760
    %364 = vmatpush.msra.mxu0 %v363
    %v365 = vand.u32 %v217, 4294901760
    %v366 = vsub.f32 %v217, %v365
    %v367 = vand.u32 %v366, 4294901760
    %v368 = vsub.f32 %v366, %v367
    %v369 = vand.u32 %v368, 4294901760
    %370 = vmatpush.msra.mxu0 %v369
    %v371 = vand.u32 %v215, 4294901760
    %v372 = vsub.f32 %v215, %v371
    %v373 = vand.u32 %v372, 4294901760
    %v374 = vsub.f32 %v372, %v373
    %v375 = vand.u32 %v374, 4294901760
    %376 = vmatpush.msra.mxu0 %v375
    %v377 = vand.u32 %v213, 4294901760
    %v378 = vsub.f32 %v213, %v377
    %v379 = vand.u32 %v378, 4294901760
    %v380 = vsub.f32 %v378, %v379
    %v381 = vand.u32 %v380, 4294901760
    %382 = vmatpush.msra.mxu0 %v381
    %v383 = vand.u32 %v211, 4294901760
    %v384 = vsub.f32 %v211, %v383
    %v385 = vand.u32 %v384, 4294901760
    %v386 = vsub.f32 %v384, %v385
    %v387 = vand.u32 %v386, 4294901760
    %388 = vmatpush.msra.mxu0 %v387
    %v389 = vand.u32 %v209, 4294901760
    %v390 = vsub.f32 %v209, %v389
    %v391 = vand.u32 %v390, 4294901760
    %v392 = vsub.f32 %v390, %v391
    %v393 = vand.u32 %v392, 4294901760
    %394 = vmatpush.msra.mxu0 %v393
    %v395 = vand.u32 %v207, 4294901760
    %v396 = vsub.f32 %v207, %v395
    %v397 = vand.u32 %v396, 4294901760
    %v398 = vsub.f32 %v396, %v397
    %v399 = vand.u32 %v398, 4294901760
    %400 = vmatpush.msra.mxu0 %v399
    %v401 = vand.u32 %v205, 4294901760
    %v402 = vsub.f32 %v205, %v401
    %v403 = vand.u32 %v402, 4294901760
    %v404 = vsub.f32 %v402, %v403
    %v405 = vand.u32 %v404, 4294901760
    %406 = vmatpush.msra.mxu0 %v405
    %v407 = vand.u32 %v203, 4294901760
    %v408 = vsub.f32 %v203, %v407
    %v409 = vand.u32 %v408, 4294901760
    %v410 = vsub.f32 %v408, %v409
    %v411 = vand.u32 %v410, 4294901760
    %412 = vmatpush.msra.mxu0 %v411
    %v413 = vand.u32 %v272, 4294901760
    %414 = vmatmul.f32.gmra.mxu0 %v413
    %v415 = vpop.f32.mrf.mxu0
    %v416 = vadd.f32 %v315, %v415
    %417 = vdwg.mxu0
    %v418 = vand.u32 %v233, 4294901760
    %v419 = vsub.f32 %v233, %v418
    %420 = vmatpush.msra.mxu0 %v419
    %v421 = vand.u32 %v231, 4294901760
    %v422 = vsub.f32 %v231, %v421
    %423 = vmatpush.msra.mxu0 %v422
    %v424 = vand.u32 %v229, 4294901760
    %v425 = vsub.f32 %v229, %v424
    %426 = vmatpush.msra.mxu0 %v425
    %v427 = vand.u32 %v227, 4294901760
    %v428 = vsub.f32 %v227, %v427
    %429 = vmatpush.msra.mxu0 %v428
    %v430 = vand.u32 %v225, 4294901760
    %v431 = vsub.f32 %v225, %v430
    %432 = vmatpush.msra.mxu0 %v431
    %v433 = vand.u32 %v223, 4294901760
    %v434 = vsub.f32 %v223, %v433
    %435 = vmatpush.msra.mxu0 %v434
    %v436 = vand.u32 %v221, 4294901760
    %v437 = vsub.f32 %v221, %v436
    %438 = vmatpush.msra.mxu0 %v437
    %v439 = vand.u32 %v219, 4294901760
    %v440 = vsub.f32 %v219, %v439
    %441 = vmatpush.msra.mxu0 %v440
    %v442 = vand.u32 %v217, 4294901760
    %v443 = vsub.f32 %v217, %v442
    %444 = vmatpush.msra.mxu0 %v443
    %v445 = vand.u32 %v215, 4294901760
    %v446 = vsub.f32 %v215, %v445
    %447 = vmatpush.msra.mxu0 %v446
    %v448 = vand.u32 %v213, 4294901760
    %v449 = vsub.f32 %v213, %v448
    %450 = vmatpush.msra.mxu0 %v449
    %v451 = vand.u32 %v211, 4294901760
    %v452 = vsub.f32 %v211, %v451
    %453 = vmatpush.msra.mxu0 %v452
    %v454 = vand.u32 %v209, 4294901760
    %v455 = vsub.f32 %v209, %v454
    %456 = vmatpush.msra.mxu0 %v455
    %v457 = vand.u32 %v207, 4294901760
    %v458 = vsub.f32 %v207, %v457
    %459 = vmatpush.msra.mxu0 %v458
    %v460 = vand.u32 %v205, 4294901760
    %v461 = vsub.f32 %v205, %v460
    %462 = vmatpush.msra.mxu0 %v461
    %v463 = vand.u32 %v203, 4294901760
    %v464 = vsub.f32 %v203, %v463
    %465 = vmatpush.msra.mxu0 %v464
    %v466 = vand.u32 %v272, 4294901760
    %v467 = vsub.f32 %v272, %v466
    %468 = vmatmul.f32.gmra.mxu0 %v467
    %v469 = vpop.f32.mrf.mxu0
    %v470 = vadd.f32 %v416, %v469
    %471 = vdwg.mxu0
    %v472 = vand.u32 %v233, 4294901760
    %473 = vmatpush.msra.mxu0 %v472
    %v474 = vand.u32 %v231, 4294901760
    %475 = vmatpush.msra.mxu0 %v474
    %v476 = vand.u32 %v229, 4294901760
    %477 = vmatpush.msra.mxu0 %v476
    %v478 = vand.u32 %v227, 4294901760
    %479 = vmatpush.msra.mxu0 %v478
    %v480 = vand.u32 %v225, 4294901760
    %481 = vmatpush.msra.mxu0 %v480
    %v482 = vand.u32 %v223, 4294901760
    %483 = vmatpush.msra.mxu0 %v482
    %v484 = vand.u32 %v221, 4294901760
    %485 = vmatpush.msra.mxu0 %v484
    %v486 = vand.u32 %v219, 4294901760
    %487 = vmatpush.msra.mxu0 %v486
    %v488 = vand.u32 %v217, 4294901760
    %489 = vmatpush.msra.mxu0 %v488
    %v490 = vand.u32 %v215, 4294901760
    %491 = vmatpush.msra.mxu0 %v490
    %v492 = vand.u32 %v213, 4294901760
    %493 = vmatpush.msra.mxu0 %v492
    %v494 = vand.u32 %v211, 4294901760
    %495 = vmatpush.msra.mxu0 %v494
    %v496 = vand.u32 %v209, 4294901760
    %497 = vmatpush.msra.mxu0 %v496
    %v498 = vand.u32 %v207, 4294901760
    %499 = vmatpush.msra.mxu0 %v498
    %v500 = vand.u32 %v205, 4294901760
    %501 = vmatpush.msra.mxu0 %v500
    %v502 = vand.u32 %v203, 4294901760
    %503 = vmatpush.msra.mxu0 %v502
    %v504 = vand.u32 %v272, 4294901760
    %v505 = vsub.f32 %v272, %v504
    %v506 = vand.u32 %v505, 4294901760
    %507 = vmatmul.f32.gmra.mxu0 %v506
    %v508 = vpop.f32.mrf.mxu0
    %v509 = vadd.f32 %v470, %v508
    %510 = vdwg.mxu0
    %v511 = vand.u32 %v233, 4294901760
    %v512 = vsub.f32 %v233, %v511
    %v513 = vand.u32 %v512, 4294901760
    %514 = vmatpush.msra.mxu0 %v513
    %v515 = vand.u32 %v231, 4294901760
    %v516 = vsub.f32 %v231, %v515
    %v517 = vand.u32 %v516, 4294901760
    %518 = vmatpush.msra.mxu0 %v517
    %v519 = vand.u32 %v229, 4294901760
    %v520 = vsub.f32 %v229, %v519
    %v521 = vand.u32 %v520, 4294901760
    %522 = vmatpush.msra.mxu0 %v521
    %v523 = vand.u32 %v227, 4294901760
    %v524 = vsub.f32 %v227, %v523
    %v525 = vand.u32 %v524, 4294901760
    %526 = vmatpush.msra.mxu0 %v525
    %v527 = vand.u32 %v225, 4294901760
    %v528 = vsub.f32 %v225, %v527
    %v529 = vand.u32 %v528, 4294901760
    %530 = vmatpush.msra.mxu0 %v529
    %v531 = vand.u32 %v223, 4294901760
    %v532 = vsub.f32 %v223, %v531
    %v533 = vand.u32 %v532, 4294901760
    %534 = vmatpush.msra.mxu0 %v533
    %v535 = vand.u32 %v221, 4294901760
    %v536 = vsub.f32 %v221, %v535
    %v537 = vand.u32 %v536, 4294901760
    %538 = vmatpush.msra.mxu0 %v537
    %v539 = vand.u32 %v219, 4294901760
    %v540 = vsub.f32 %v219, %v539
    %v541 = vand.u32 %v540, 4294901760
    %542 = vmatpush.msra.mxu0 %v541
    %v543 = vand.u32 %v217, 4294901760
    %v544 = vsub.f32 %v217, %v543
    %v545 = vand.u32 %v544, 4294901760
    %546 = vmatpush.msra.mxu0 %v545
    %v547 = vand.u32 %v215, 4294901760
    %v548 = vsub.f32 %v215, %v547
    %v549 = vand.u32 %v548, 4294901760
    %550 = vmatpush.msra.mxu0 %v549
    %v551 = vand.u32 %v213, 4294901760
    %v552 = vsub.f32 %v213, %v551
    %v553 = vand.u32 %v552, 4294901760
    %554 = vmatpush.msra.mxu0 %v553
    %v555 = vand.u32 %v211, 4294901760
    %v556 = vsub.f32 %v211, %v555
    %v557 = vand.u32 %v556, 4294901760
    %558 = vmatpush.msra.mxu0 %v557
    %v559 = vand.u32 %v209, 4294901760
    %v560 = vsub.f32 %v209, %v559
    %v561 = vand.u32 %v560, 4294901760
    %562 = vmatpush.msra.mxu0 %v561
    %v563 = vand.u32 %v207, 4294901760
    %v564 = vsub.f32 %v207, %v563
    %v565 = vand.u32 %v564, 4294901760
    %566 = vmatpush.msra.mxu0 %v565
    %v567 = vand.u32 %v205, 4294901760
    %v568 = vsub.f32 %v205, %v567
    %v569 = vand.u32 %v568, 4294901760
    %570 = vmatpush.msra.mxu0 %v569
    %v571 = vand.u32 %v203, 4294901760
    %v572 = vsub.f32 %v203, %v571
    %v573 = vand.u32 %v572, 4294901760
    %574 = vmatpush.msra.mxu0 %v573
    %v575 = vand.u32 %v272, 4294901760
    %576 = vmatmul.f32.gmra.mxu0 %v575
    %v577 = vpop.f32.mrf.mxu0
    %v578 = vadd.f32 %v509, %v577
    %579 = vdwg.mxu0
    %v580 = vand.u32 %v233, 4294901760
    %581 = vmatpush.msra.mxu0 %v580
    %v582 = vand.u32 %v231, 4294901760
    %583 = vmatpush.msra.mxu0 %v582
    %v584 = vand.u32 %v229, 4294901760
    %585 = vmatpush.msra.mxu0 %v584
    %v586 = vand.u32 %v227, 4294901760
    %587 = vmatpush.msra.mxu0 %v586
    %v588 = vand.u32 %v225, 4294901760
    %589 = vmatpush.msra.mxu0 %v588
    %v590 = vand.u32 %v223, 4294901760
    %591 = vmatpush.msra.mxu0 %v590
    %v592 = vand.u32 %v221, 4294901760
    %593 = vmatpush.msra.mxu0 %v592
    %v594 = vand.u32 %v219, 4294901760
    %595 = vmatpush.msra.mxu0 %v594
    %v596 = vand.u32 %v217, 4294901760
    %597 = vmatpush.msra.mxu0 %v596
    %v598 = vand.u32 %v215, 4294901760
    %599 = vmatpush.msra.mxu0 %v598
    %v600 = vand.u32 %v213, 4294901760
    %601 = vmatpush.msra.mxu0 %v600
    %v602 = vand.u32 %v211, 4294901760
    %603 = vmatpush.msra.mxu0 %v602
    %v604 = vand.u32 %v209, 4294901760
    %605 = vmatpush.msra.mxu0 %v604
    %v606 = vand.u32 %v207, 4294901760
    %607 = vmatpush.msra.mxu0 %v606
    %v608 = vand.u32 %v205, 4294901760
    %609 = vmatpush.msra.mxu0 %v608
    %v610 = vand.u32 %v203, 4294901760
    %611 = vmatpush.msra.mxu0 %v610
    %v612 = vand.u32 %v272, 4294901760
    %613 = vmatmul.f32.gmra.mxu0 %v612
    %v614 = vpop.f32.mrf.mxu0
    %v615 = vadd.f32 %v578, %v614
    %616 = vdwg.mxu0
    %v617 = vand.u32 %v265, 4294901760
    %618 = vmatpush.msra.mxu0 %v617
    %v619 = vand.u32 %v263, 4294901760
    %620 = vmatpush.msra.mxu0 %v619
    %v621 = vand.u32 %v261, 4294901760
    %622 = vmatpush.msra.mxu0 %v621
    %v623 = vand.u32 %v259, 4294901760
    %624 = vmatpush.msra.mxu0 %v623
    %v625 = vand.u32 %v257, 4294901760
    %626 = vmatpush.msra.mxu0 %v625
    %v627 = vand.u32 %v255, 4294901760
    %628 = vmatpush.msra.mxu0 %v627
    %v629 = vand.u32 %v253, 4294901760
    %630 = vmatpush.msra.mxu0 %v629
    %v631 = vand.u32 %v251, 4294901760
    %632 = vmatpush.msra.mxu0 %v631
    %v633 = vand.u32 %v249, 4294901760
    %634 = vmatpush.msra.mxu0 %v633
    %v635 = vand.u32 %v247, 4294901760
    %636 = vmatpush.msra.mxu0 %v635
    %v637 = vand.u32 %v245, 4294901760
    %638 = vmatpush.msra.mxu0 %v637
    %v639 = vand.u32 %v243, 4294901760
    %640 = vmatpush.msra.mxu0 %v639
    %v641 = vand.u32 %v241, 4294901760
    %642 = vmatpush.msra.mxu0 %v641
    %v643 = vand.u32 %v239, 4294901760
    %644 = vmatpush.msra.mxu0 %v643
    %v645 = vand.u32 %v237, 4294901760
    %646 = vmatpush.msra.mxu0 %v645
    %v647 = vand.u32 %v235, 4294901760
    %648 = vmatpush.msra.mxu0 %v647
    %v649 = vand.u32 %v273, 4294901760
    %v650 = vsub.f32 %v273, %v649
    %v651 = vand.u32 %v650, 4294901760
    %v652 = vsub.f32 %v650, %v651
    %v653 = vand.u32 %v652, 4294901760
    %654 = vmatmul.f32.gmra.mxu0 %v653
    %v655 = vpop.f32.mrf.mxu0
    %v656 = vadd.f32 %v615, %v655
    %657 = vdwg.mxu0
    %v658 = vand.u32 %v265, 4294901760
    %v659 = vsub.f32 %v265, %v658
    %v660 = vand.u32 %v659, 4294901760
    %v661 = vsub.f32 %v659, %v660
    %v662 = vand.u32 %v661, 4294901760
    %663 = vmatpush.msra.mxu0 %v662
    %v664 = vand.u32 %v263, 4294901760
    %v665 = vsub.f32 %v263, %v664
    %v666 = vand.u32 %v665, 4294901760
    %v667 = vsub.f32 %v665, %v666
    %v668 = vand.u32 %v667, 4294901760
    %669 = vmatpush.msra.mxu0 %v668
    %v670 = vand.u32 %v261, 4294901760
    %v671 = vsub.f32 %v261, %v670
    %v672 = vand.u32 %v671, 4294901760
    %v673 = vsub.f32 %v671, %v672
    %v674 = vand.u32 %v673, 4294901760
    %675 = vmatpush.msra.mxu0 %v674
    %v676 = vand.u32 %v259, 4294901760
    %v677 = vsub.f32 %v259, %v676
    %v678 = vand.u32 %v677, 4294901760
    %v679 = vsub.f32 %v677, %v678
    %v680 = vand.u32 %v679, 4294901760
    %681 = vmatpush.msra.mxu0 %v680
    %v682 = vand.u32 %v257, 4294901760
    %v683 = vsub.f32 %v257, %v682
    %v684 = vand.u32 %v683, 4294901760
    %v685 = vsub.f32 %v683, %v684
    %v686 = vand.u32 %v685, 4294901760
    %687 = vmatpush.msra.mxu0 %v686
    %v688 = vand.u32 %v255, 4294901760
    %v689 = vsub.f32 %v255, %v688
    %v690 = vand.u32 %v689, 4294901760
    %v691 = vsub.f32 %v689, %v690
    %v692 = vand.u32 %v691, 4294901760
    %693 = vmatpush.msra.mxu0 %v692
    %v694 = vand.u32 %v253, 4294901760
    %v695 = vsub.f32 %v253, %v694
    %v696 = vand.u32 %v695, 4294901760
    %v697 = vsub.f32 %v695, %v696
    %v698 = vand.u32 %v697, 4294901760
    %699 = vmatpush.msra.mxu0 %v698
    %v700 = vand.u32 %v251, 4294901760
    %v701 = vsub.f32 %v251, %v700
    %v702 = vand.u32 %v701, 4294901760
    %v703 = vsub.f32 %v701, %v702
    %v704 = vand.u32 %v703, 4294901760
    %705 = vmatpush.msra.mxu0 %v704
    %v706 = vand.u32 %v249, 4294901760
    %v707 = vsub.f32 %v249, %v706
    %v708 = vand.u32 %v707, 4294901760
    %v709 = vsub.f32 %v707, %v708
    %v710 = vand.u32 %v709, 4294901760
    %711 = vmatpush.msra.mxu0 %v710
    %v712 = vand.u32 %v247, 4294901760
    %v713 = vsub.f32 %v247, %v712
    %v714 = vand.u32 %v713, 4294901760
    %v715 = vsub.f32 %v713, %v714
    %v716 = vand.u32 %v715, 4294901760
    %717 = vmatpush.msra.mxu0 %v716
    %v718 = vand.u32 %v245, 4294901760
    %v719 = vsub.f32 %v245, %v718
    %v720 = vand.u32 %v719, 4294901760
    %v721 = vsub.f32 %v719, %v720
    %v722 = vand.u32 %v721, 4294901760
    %723 = vmatpush.msra.mxu0 %v722
    %v724 = vand.u32 %v243, 4294901760
    %v725 = vsub.f32 %v243, %v724
    %v726 = vand.u32 %v725, 4294901760
    %v727 = vsub.f32 %v725, %v726
    %v728 = vand.u32 %v727, 4294901760
    %729 = vmatpush.msra.mxu0 %v728
    %v730 = vand.u32 %v241, 4294901760
    %v731 = vsub.f32 %v241, %v730
    %v732 = vand.u32 %v731, 4294901760
    %v733 = vsub.f32 %v731, %v732
    %v734 = vand.u32 %v733, 4294901760
    %735 = vmatpush.msra.mxu0 %v734
    %v736 = vand.u32 %v239, 4294901760
    %v737 = vsub.f32 %v239, %v736
    %v738 = vand.u32 %v737, 4294901760
    %v739 = vsub.f32 %v737, %v738
    %v740 = vand.u32 %v739, 4294901760
    %741 = vmatpush.msra.mxu0 %v740
    %v742 = vand.u32 %v237, 4294901760
    %v743 = vsub.f32 %v237, %v742
    %v744 = vand.u32 %v743, 4294901760
    %v745 = vsub.f32 %v743, %v744
    %v746 = vand.u32 %v745, 4294901760
    %747 = vmatpush.msra.mxu0 %v746
    %v748 = vand.u32 %v235, 4294901760
    %v749 = vsub.f32 %v235, %v748
    %v750 = vand.u32 %v749, 4294901760
    %v751 = vsub.f32 %v749, %v750
    %v752 = vand.u32 %v751, 4294901760
    %753 = vmatpush.msra.mxu0 %v752
    %v754 = vand.u32 %v273, 4294901760
    %755 = vmatmul.f32.gmra.mxu0 %v754
    %v756 = vpop.f32.mrf.mxu0
    %v757 = vadd.f32 %v656, %v756
    %758 = vdwg.mxu0
    %v759 = vand.u32 %v265, 4294901760
    %v760 = vsub.f32 %v265, %v759
    %761 = vmatpush.msra.mxu0 %v760
    %v762 = vand.u32 %v263, 4294901760
    %v763 = vsub.f32 %v263, %v762
    %764 = vmatpush.msra.mxu0 %v763
    %v765 = vand.u32 %v261, 4294901760
    %v766 = vsub.f32 %v261, %v765
    %767 = vmatpush.msra.mxu0 %v766
    %v768 = vand.u32 %v259, 4294901760
    %v769 = vsub.f32 %v259, %v768
    %770 = vmatpush.msra.mxu0 %v769
    %v771 = vand.u32 %v257, 4294901760
    %v772 = vsub.f32 %v257, %v771
    %773 = vmatpush.msra.mxu0 %v772
    %v774 = vand.u32 %v255, 4294901760
    %v775 = vsub.f32 %v255, %v774
    %776 = vmatpush.msra.mxu0 %v775
    %v777 = vand.u32 %v253, 4294901760
    %v778 = vsub.f32 %v253, %v777
    %779 = vmatpush.msra.mxu0 %v778
    %v780 = vand.u32 %v251, 4294901760
    %v781 = vsub.f32 %v251, %v780
    %782 = vmatpush.msra.mxu0 %v781
    %v783 = vand.u32 %v249, 4294901760
    %v784 = vsub.f32 %v249, %v783
    %785 = vmatpush.msra.mxu0 %v784
    %v786 = vand.u32 %v247, 4294901760
    %v787 = vsub.f32 %v247, %v786
    %788 = vmatpush.msra.mxu0 %v787
    %v789 = vand.u32 %v245, 4294901760
    %v790 = vsub.f32 %v245, %v789
    %791 = vmatpush.msra.mxu0 %v790
    %v792 = vand.u32 %v243, 4294901760
    %v793 = vsub.f32 %v243, %v792
    %794 = vmatpush.msra.mxu0 %v793
    %v795 = vand.u32 %v241, 4294901760
    %v796 = vsub.f32 %v241, %v795
    %797 = vmatpush.msra.mxu0 %v796
    %v798 = vand.u32 %v239, 4294901760
    %v799 = vsub.f32 %v239, %v798
    %800 = vmatpush.msra.mxu0 %v799
    %v801 = vand.u32 %v237, 4294901760
    %v802 = vsub.f32 %v237, %v801
    %803 = vmatpush.msra.mxu0 %v802
    %v804 = vand.u32 %v235, 4294901760
    %v805 = vsub.f32 %v235, %v804
    %806 = vmatpush.msra.mxu0 %v805
    %v807 = vand.u32 %v273, 4294901760
    %v808 = vsub.f32 %v273, %v807
    %809 = vmatmul.f32.gmra.mxu0 %v808
    %v810 = vpop.f32.mrf.mxu0
    %v811 = vadd.f32 %v757, %v810
    %812 = vdwg.mxu0
    %v813 = vand.u32 %v265, 4294901760
    %814 = vmatpush.msra.mxu0 %v813
    %v815 = vand.u32 %v263, 4294901760
    %816 = vmatpush.msra.mxu0 %v815
    %v817 = vand.u32 %v261, 4294901760
    %818 = vmatpush.msra.mxu0 %v817
    %v819 = vand.u32 %v259, 4294901760
    %820 = vmatpush.msra.mxu0 %v819
    %v821 = vand.u32 %v257, 4294901760
    %822 = vmatpush.msra.mxu0 %v821
    %v823 = vand.u32 %v255, 4294901760
    %824 = vmatpush.msra.mxu0 %v823
    %v825 = vand.u32 %v253, 4294901760
    %826 = vmatpush.msra.mxu0 %v825
    %v827 = vand.u32 %v251, 4294901760
    %828 = vmatpush.msra.mxu0 %v827
    %v829 = vand.u32 %v249, 4294901760
    %830 = vmatpush.msra.mxu0 %v829
    %v831 = vand.u32 %v247, 4294901760
    %832 = vmatpush.msra.mxu0 %v831
    %v833 = vand.u32 %v245, 4294901760
    %834 = vmatpush.msra.mxu0 %v833
    %v835 = vand.u32 %v243, 4294901760
    %836 = vmatpush.msra.mxu0 %v835
    %v837 = vand.u32 %v241, 4294901760
    %838 = vmatpush.msra.mxu0 %v837
    %v839 = vand.u32 %v239, 4294901760
    %840 = vmatpush.msra.mxu0 %v839
    %v841 = vand.u32 %v237, 4294901760
    %842 = vmatpush.msra.mxu0 %v841
    %v843 = vand.u32 %v235, 4294901760
    %844 = vmatpush.msra.mxu0 %v843
    %v845 = vand.u32 %v273, 4294901760
    %v846 = vsub.f32 %v273, %v845
    %v847 = vand.u32 %v846, 4294901760
    %848 = vmatmul.f32.gmra.mxu0 %v847
    %v849 = vpop.f32.mrf.mxu0
    %v850 = vadd.f32 %v811, %v849
    %851 = vdwg.mxu0
    %v852 = vand.u32 %v265, 4294901760
    %v853 = vsub.f32 %v265, %v852
    %v854 = vand.u32 %v853, 4294901760
    %855 = vmatpush.msra.mxu0 %v854
    %v856 = vand.u32 %v263, 4294901760
    %v857 = vsub.f32 %v263, %v856
    %v858 = vand.u32 %v857, 4294901760
    %859 = vmatpush.msra.mxu0 %v858
    %v860 = vand.u32 %v261, 4294901760
    %v861 = vsub.f32 %v261, %v860
    %v862 = vand.u32 %v861, 4294901760
    %863 = vmatpush.msra.mxu0 %v862
    %v864 = vand.u32 %v259, 4294901760
    %v865 = vsub.f32 %v259, %v864
    %v866 = vand.u32 %v865, 4294901760
    %867 = vmatpush.msra.mxu0 %v866
    %v868 = vand.u32 %v257, 4294901760
    %v869 = vsub.f32 %v257, %v868
    %v870 = vand.u32 %v869, 4294901760
    %871 = vmatpush.msra.mxu0 %v870
    %v872 = vand.u32 %v255, 4294901760
    %v873 = vsub.f32 %v255, %v872
    %v874 = vand.u32 %v873, 4294901760
    %875 = vmatpush.msra.mxu0 %v874
    %v876 = vand.u32 %v253, 4294901760
    %v877 = vsub.f32 %v253, %v876
    %v878 = vand.u32 %v877, 4294901760
    %879 = vmatpush.msra.mxu0 %v878
    %v880 = vand.u32 %v251, 4294901760
    %v881 = vsub.f32 %v251, %v880
    %v882 = vand.u32 %v881, 4294901760
    %883 = vmatpush.msra.mxu0 %v882
    %v884 = vand.u32 %v249, 4294901760
    %v885 = vsub.f32 %v249, %v884
    %v886 = vand.u32 %v885, 4294901760
    %887 = vmatpush.msra.mxu0 %v886
    %v888 = vand.u32 %v247, 4294901760
    %v889 = vsub.f32 %v247, %v888
    %v890 = vand.u32 %v889, 4294901760
    %891 = vmatpush.msra.mxu0 %v890
    %v892 = vand.u32 %v245, 4294901760
    %v893 = vsub.f32 %v245, %v892
    %v894 = vand.u32 %v893, 4294901760
    %895 = vmatpush.msra.mxu0 %v894
    %v896 = vand.u32 %v243, 4294901760
    %v897 = vsub.f32 %v243, %v896
    %v898 = vand.u32 %v897, 4294901760
    %899 = vmatpush.msra.mxu0 %v898
    %v900 = vand.u32 %v241, 4294901760
    %v901 = vsub.f32 %v241, %v900
    %v902 = vand.u32 %v901, 4294901760
    %903 = vmatpush.msra.mxu0 %v902
    %v904 = vand.u32 %v239, 4294901760
    %v905 = vsub.f32 %v239, %v904
    %v906 = vand.u32 %v905, 4294901760
    %907 = vmatpush.msra.mxu0 %v906
    %v908 = vand.u32 %v237, 4294901760
    %v909 = vsub.f32 %v237, %v908
    %v910 = vand.u32 %v909, 4294901760
    %911 = vmatpush.msra.mxu0 %v910
    %v912 = vand.u32 %v235, 4294901760
    %v913 = vsub.f32 %v235, %v912
    %v914 = vand.u32 %v913, 4294901760
    %915 = vmatpush.msra.mxu0 %v914
    %v916 = vand.u32 %v273, 4294901760
    %917 = vmatmul.f32.gmra.mxu0 %v916
    %v918 = vpop.f32.mrf.mxu0
    %v919 = vadd.f32 %v850, %v918
    %920 = vdwg.mxu0
    %v921 = vand.u32 %v265, 4294901760
    %922 = vmatpush.msra.mxu0 %v921
    %v923 = vand.u32 %v263, 4294901760
    %924 = vmatpush.msra.mxu0 %v923
    %v925 = vand.u32 %v261, 4294901760
    %926 = vmatpush.msra.mxu0 %v925
    %v927 = vand.u32 %v259, 4294901760
    %928 = vmatpush.msra.mxu0 %v927
    %v929 = vand.u32 %v257, 4294901760
    %930 = vmatpush.msra.mxu0 %v929
    %v931 = vand.u32 %v255, 4294901760
    %932 = vmatpush.msra.mxu0 %v931
    %v933 = vand.u32 %v253, 4294901760
    %934 = vmatpush.msra.mxu0 %v933
    %v935 = vand.u32 %v251, 4294901760
    %936 = vmatpush.msra.mxu0 %v935
    %v937 = vand.u32 %v249, 4294901760
    %938 = vmatpush.msra.mxu0 %v937
    %v939 = vand.u32 %v247, 4294901760
    %940 = vmatpush.msra.mxu0 %v939
    %v941 = vand.u32 %v245, 4294901760
    %942 = vmatpush.msra.mxu0 %v941
    %v943 = vand.u32 %v243, 4294901760
    %944 = vmatpush.msra.mxu0 %v943
    %v945 = vand.u32 %v241, 4294901760
    %946 = vmatpush.msra.mxu0 %v945
    %v947 = vand.u32 %v239, 4294901760
    %948 = vmatpush.msra.mxu0 %v947
    %v949 = vand.u32 %v237, 4294901760
    %950 = vmatpush.msra.mxu0 %v949
    %v951 = vand.u32 %v235, 4294901760
    %952 = vmatpush.msra.mxu0 %v951
    %v953 = vand.u32 %v273, 4294901760
    %954 = vmatmul.f32.gmra.mxu0 %v953
    %v955 = vpop.f32.mrf.mxu0
    %v956 = vadd.f32 %v919, %v955
    %957 = vdwg.mxu0
    %v958 = vand.u32 %v234, 4294901760
    %959 = vmatpush.msra.mxu0 %v958
    %v960 = vand.u32 %v232, 4294901760
    %961 = vmatpush.msra.mxu0 %v960
    %v962 = vand.u32 %v230, 4294901760
    %963 = vmatpush.msra.mxu0 %v962
    %v964 = vand.u32 %v228, 4294901760
    %965 = vmatpush.msra.mxu0 %v964
    %v966 = vand.u32 %v226, 4294901760
    %967 = vmatpush.msra.mxu0 %v966
    %v968 = vand.u32 %v224, 4294901760
    %969 = vmatpush.msra.mxu0 %v968
    %v970 = vand.u32 %v222, 4294901760
    %971 = vmatpush.msra.mxu0 %v970
    %v972 = vand.u32 %v220, 4294901760
    %973 = vmatpush.msra.mxu0 %v972
    %v974 = vand.u32 %v218, 4294901760
    %975 = vmatpush.msra.mxu0 %v974
    %v976 = vand.u32 %v216, 4294901760
    %977 = vmatpush.msra.mxu0 %v976
    %v978 = vand.u32 %v214, 4294901760
    %979 = vmatpush.msra.mxu0 %v978
    %v980 = vand.u32 %v212, 4294901760
    %981 = vmatpush.msra.mxu0 %v980
    %v982 = vand.u32 %v210, 4294901760
    %983 = vmatpush.msra.mxu0 %v982
    %v984 = vand.u32 %v208, 4294901760
    %985 = vmatpush.msra.mxu0 %v984
    %v986 = vand.u32 %v206, 4294901760
    %987 = vmatpush.msra.mxu0 %v986
    %v988 = vand.u32 %v204, 4294901760
    %989 = vmatpush.msra.mxu0 %v988
    %v990 = vand.u32 %v272, 4294901760
    %v991 = vsub.f32 %v272, %v990
    %v992 = vand.u32 %v991, 4294901760
    %v993 = vsub.f32 %v991, %v992
    %v994 = vand.u32 %v993, 4294901760
    %995 = vmatmul.f32.gmra.mxu0 %v994
    %v996 = vpop.f32.mrf.mxu0
    %v997 = vadd.f32 0.0, %v996
    %998 = vdwg.mxu0
    %v999 = vand.u32 %v234, 4294901760
    %v1000 = vsub.f32 %v234, %v999
    %v1001 = vand.u32 %v1000, 4294901760
    %v1002 = vsub.f32 %v1000, %v1001
    %v1003 = vand.u32 %v1002, 4294901760
    %1004 = vmatpush.msra.mxu0 %v1003
    %v1005 = vand.u32 %v232, 4294901760
    %v1006 = vsub.f32 %v232, %v1005
    %v1007 = vand.u32 %v1006, 4294901760
    %v1008 = vsub.f32 %v1006, %v1007
    %v1009 = vand.u32 %v1008, 4294901760
    %1010 = vmatpush.msra.mxu0 %v1009
    %v1011 = vand.u32 %v230, 4294901760
    %v1012 = vsub.f32 %v230, %v1011
    %v1013 = vand.u32 %v1012, 4294901760
    %v1014 = vsub.f32 %v1012, %v1013
    %v1015 = vand.u32 %v1014, 4294901760
    %1016 = vmatpush.msra.mxu0 %v1015
    %v1017 = vand.u32 %v228, 4294901760
    %v1018 = vsub.f32 %v228, %v1017
    %v1019 = vand.u32 %v1018, 4294901760
    %v1020 = vsub.f32 %v1018, %v1019
    %v1021 = vand.u32 %v1020, 4294901760
    %1022 = vmatpush.msra.mxu0 %v1021
    %v1023 = vand.u32 %v226, 4294901760
    %v1024 = vsub.f32 %v226, %v1023
    %v1025 = vand.u32 %v1024, 4294901760
    %v1026 = vsub.f32 %v1024, %v1025
    %v1027 = vand.u32 %v1026, 4294901760
    %1028 = vmatpush.msra.mxu0 %v1027
    %v1029 = vand.u32 %v224, 4294901760
    %v1030 = vsub.f32 %v224, %v1029
    %v1031 = vand.u32 %v1030, 4294901760
    %v1032 = vsub.f32 %v1030, %v1031
    %v1033 = vand.u32 %v1032, 4294901760
    %1034 = vmatpush.msra.mxu0 %v1033
    %v1035 = vand.u32 %v222, 4294901760
    %v1036 = vsub.f32 %v222, %v1035
    %v1037 = vand.u32 %v1036, 4294901760
    %v1038 = vsub.f32 %v1036, %v1037
    %v1039 = vand.u32 %v1038, 4294901760
    %1040 = vmatpush.msra.mxu0 %v1039
    %v1041 = vand.u32 %v220, 4294901760
    %v1042 = vsub.f32 %v220, %v1041
    %v1043 = vand.u32 %v1042, 4294901760
    %v1044 = vsub.f32 %v1042, %v1043
    %v1045 = vand.u32 %v1044, 4294901760
    %1046 = vmatpush.msra.mxu0 %v1045
    %v1047 = vand.u32 %v218, 4294901760
    %v1048 = vsub.f32 %v218, %v1047
    %v1049 = vand.u32 %v1048, 4294901760
    %v1050 = vsub.f32 %v1048, %v1049
    %v1051 = vand.u32 %v1050, 4294901760
    %1052 = vmatpush.msra.mxu0 %v1051
    %v1053 = vand.u32 %v216, 4294901760
    %v1054 = vsub.f32 %v216, %v1053
    %v1055 = vand.u32 %v1054, 4294901760
    %v1056 = vsub.f32 %v1054, %v1055
    %v1057 = vand.u32 %v1056, 4294901760
    %1058 = vmatpush.msra.mxu0 %v1057
    %v1059 = vand.u32 %v214, 4294901760
    %v1060 = vsub.f32 %v214, %v1059
    %v1061 = vand.u32 %v1060, 4294901760
    %v1062 = vsub.f32 %v1060, %v1061
    %v1063 = vand.u32 %v1062, 4294901760
    %1064 = vmatpush.msra.mxu0 %v1063
    %v1065 = vand.u32 %v212, 4294901760
    %v1066 = vsub.f32 %v212, %v1065
    %v1067 = vand.u32 %v1066, 4294901760
    %v1068 = vsub.f32 %v1066, %v1067
    %v1069 = vand.u32 %v1068, 4294901760
    %1070 = vmatpush.msra.mxu0 %v1069
    %v1071 = vand.u32 %v210, 4294901760
    %v1072 = vsub.f32 %v210, %v1071
    %v1073 = vand.u32 %v1072, 4294901760
    %v1074 = vsub.f32 %v1072, %v1073
    %v1075 = vand.u32 %v1074, 4294901760
    %1076 = vmatpush.msra.mxu0 %v1075
    %v1077 = vand.u32 %v208, 4294901760
    %v1078 = vsub.f32 %v208, %v1077
    %v1079 = vand.u32 %v1078, 4294901760
    %v1080 = vsub.f32 %v1078, %v1079
    %v1081 = vand.u32 %v1080, 4294901760
    %1082 = vmatpush.msra.mxu0 %v1081
    %v1083 = vand.u32 %v206, 4294901760
    %v1084 = vsub.f32 %v206, %v1083
    %v1085 = vand.u32 %v1084, 4294901760
    %v1086 = vsub.f32 %v1084, %v1085
    %v1087 = vand.u32 %v1086, 4294901760
    %1088 = vmatpush.msra.mxu0 %v1087
    %v1089 = vand.u32 %v204, 4294901760
    %v1090 = vsub.f32 %v204, %v1089
    %v1091 = vand.u32 %v1090, 4294901760
    %v1092 = vsub.f32 %v1090, %v1091
    %v1093 = vand.u32 %v1092, 4294901760
    %1094 = vmatpush.msra.mxu0 %v1093
    %v1095 = vand.u32 %v272, 4294901760
    %1096 = vmatmul.f32.gmra.mxu0 %v1095
    %v1097 = vpop.f32.mrf.mxu0
    %v1098 = vadd.f32 %v997, %v1097
    %1099 = vdwg.mxu0
    %v1100 = vand.u32 %v234, 4294901760
    %v1101 = vsub.f32 %v234, %v1100
    %1102 = vmatpush.msra.mxu0 %v1101
    %v1103 = vand.u32 %v232, 4294901760
    %v1104 = vsub.f32 %v232, %v1103
    %1105 = vmatpush.msra.mxu0 %v1104
    %v1106 = vand.u32 %v230, 4294901760
    %v1107 = vsub.f32 %v230, %v1106
    %1108 = vmatpush.msra.mxu0 %v1107
    %v1109 = vand.u32 %v228, 4294901760
    %v1110 = vsub.f32 %v228, %v1109
    %1111 = vmatpush.msra.mxu0 %v1110
    %v1112 = vand.u32 %v226, 4294901760
    %v1113 = vsub.f32 %v226, %v1112
    %1114 = vmatpush.msra.mxu0 %v1113
    %v1115 = vand.u32 %v224, 4294901760
    %v1116 = vsub.f32 %v224, %v1115
    %1117 = vmatpush.msra.mxu0 %v1116
    %v1118 = vand.u32 %v222, 4294901760
    %v1119 = vsub.f32 %v222, %v1118
    %1120 = vmatpush.msra.mxu0 %v1119
    %v1121 = vand.u32 %v220, 4294901760
    %v1122 = vsub.f32 %v220, %v1121
    %1123 = vmatpush.msra.mxu0 %v1122
    %v1124 = vand.u32 %v218, 4294901760
    %v1125 = vsub.f32 %v218, %v1124
    %1126 = vmatpush.msra.mxu0 %v1125
    %v1127 = vand.u32 %v216, 4294901760
    %v1128 = vsub.f32 %v216, %v1127
    %1129 = vmatpush.msra.mxu0 %v1128
    %v1130 = vand.u32 %v214, 4294901760
    %v1131 = vsub.f32 %v214, %v1130
    %1132 = vmatpush.msra.mxu0 %v1131
    %v1133 = vand.u32 %v212, 4294901760
    %v1134 = vsub.f32 %v212, %v1133
    %1135 = vmatpush.msra.mxu0 %v1134
    %v1136 = vand.u32 %v210, 4294901760
    %v1137 = vsub.f32 %v210, %v1136
    %1138 = vmatpush.msra.mxu0 %v1137
    %v1139 = vand.u32 %v208, 4294901760
    %v1140 = vsub.f32 %v208, %v1139
    %1141 = vmatpush.msra.mxu0 %v1140
    %v1142 = vand.u32 %v206, 4294901760
    %v1143 = vsub.f32 %v206, %v1142
    %1144 = vmatpush.msra.mxu0 %v1143
    %v1145 = vand.u32 %v204, 4294901760
    %v1146 = vsub.f32 %v204, %v1145
    %1147 = vmatpush.msra.mxu0 %v1146
    %v1148 = vand.u32 %v272, 4294901760
    %v1149 = vsub.f32 %v272, %v1148
    %1150 = vmatmul.f32.gmra.mxu0 %v1149
    %v1151 = vpop.f32.mrf.mxu0
    %v1152 = vadd.f32 %v1098, %v1151
    %1153 = vdwg.mxu0
    %v1154 = vand.u32 %v234, 4294901760
    %1155 = vmatpush.msra.mxu0 %v1154
    %v1156 = vand.u32 %v232, 4294901760
    %1157 = vmatpush.msra.mxu0 %v1156
    %v1158 = vand.u32 %v230, 4294901760
    %1159 = vmatpush.msra.mxu0 %v1158
    %v1160 = vand.u32 %v228, 4294901760
    %1161 = vmatpush.msra.mxu0 %v1160
    %v1162 = vand.u32 %v226, 4294901760
    %1163 = vmatpush.msra.mxu0 %v1162
    %v1164 = vand.u32 %v224, 4294901760
    %1165 = vmatpush.msra.mxu0 %v1164
    %v1166 = vand.u32 %v222, 4294901760
    %1167 = vmatpush.msra.mxu0 %v1166
    %v1168 = vand.u32 %v220, 4294901760
    %1169 = vmatpush.msra.mxu0 %v1168
    %v1170 = vand.u32 %v218, 4294901760
    %1171 = vmatpush.msra.mxu0 %v1170
    %v1172 = vand.u32 %v216, 4294901760
    %1173 = vmatpush.msra.mxu0 %v1172
    %v1174 = vand.u32 %v214, 4294901760
    %1175 = vmatpush.msra.mxu0 %v1174
    %v1176 = vand.u32 %v212, 4294901760
    %1177 = vmatpush.msra.mxu0 %v1176
    %v1178 = vand.u32 %v210, 4294901760
    %1179 = vmatpush.msra.mxu0 %v1178
    %v1180 = vand.u32 %v208, 4294901760
    %1181 = vmatpush.msra.mxu0 %v1180
    %v1182 = vand.u32 %v206, 4294901760
    %1183 = vmatpush.msra.mxu0 %v1182
    %v1184 = vand.u32 %v204, 4294901760
    %1185 = vmatpush.msra.mxu0 %v1184
    %v1186 = vand.u32 %v272, 4294901760
    %v1187 = vsub.f32 %v272, %v1186
    %v1188 = vand.u32 %v1187, 4294901760
    %1189 = vmatmul.f32.gmra.mxu0 %v1188
    %v1190 = vpop.f32.mrf.mxu0
    %v1191 = vadd.f32 %v1152, %v1190
    %1192 = vdwg.mxu0
    %v1193 = vand.u32 %v234, 4294901760
    %v1194 = vsub.f32 %v234, %v1193
    %v1195 = vand.u32 %v1194, 4294901760
    %1196 = vmatpush.msra.mxu0 %v1195
    %v1197 = vand.u32 %v232, 4294901760
    %v1198 = vsub.f32 %v232, %v1197
    %v1199 = vand.u32 %v1198, 4294901760
    %1200 = vmatpush.msra.mxu0 %v1199
    %v1201 = vand.u32 %v230, 4294901760
    %v1202 = vsub.f32 %v230, %v1201
    %v1203 = vand.u32 %v1202, 4294901760
    %1204 = vmatpush.msra.mxu0 %v1203
    %v1205 = vand.u32 %v228, 4294901760
    %v1206 = vsub.f32 %v228, %v1205
    %v1207 = vand.u32 %v1206, 4294901760
    %1208 = vmatpush.msra.mxu0 %v1207
    %v1209 = vand.u32 %v226, 4294901760
    %v1210 = vsub.f32 %v226, %v1209
    %v1211 = vand.u32 %v1210, 4294901760
    %1212 = vmatpush.msra.mxu0 %v1211
    %v1213 = vand.u32 %v224, 4294901760
    %v1214 = vsub.f32 %v224, %v1213
    %v1215 = vand.u32 %v1214, 4294901760
    %1216 = vmatpush.msra.mxu0 %v1215
    %v1217 = vand.u32 %v222, 4294901760
    %v1218 = vsub.f32 %v222, %v1217
    %v1219 = vand.u32 %v1218, 4294901760
    %1220 = vmatpush.msra.mxu0 %v1219
    %v1221 = vand.u32 %v220, 4294901760
    %v1222 = vsub.f32 %v220, %v1221
    %v1223 = vand.u32 %v1222, 4294901760
    %1224 = vmatpush.msra.mxu0 %v1223
    %v1225 = vand.u32 %v218, 4294901760
    %v1226 = vsub.f32 %v218, %v1225
    %v1227 = vand.u32 %v1226, 4294901760
    %1228 = vmatpush.msra.mxu0 %v1227
    %v1229 = vand.u32 %v216, 4294901760
    %v1230 = vsub.f32 %v216, %v1229
    %v1231 = vand.u32 %v1230, 4294901760
    %1232 = vmatpush.msra.mxu0 %v1231
    %v1233 = vand.u32 %v214, 4294901760
    %v1234 = vsub.f32 %v214, %v1233
    %v1235 = vand.u32 %v1234, 4294901760
    %1236 = vmatpush.msra.mxu0 %v1235
    %v1237 = vand.u32 %v212, 4294901760
    %v1238 = vsub.f32 %v212, %v1237
    %v1239 = vand.u32 %v1238, 4294901760
    %1240 = vmatpush.msra.mxu0 %v1239
    %v1241 = vand.u32 %v210, 4294901760
    %v1242 = vsub.f32 %v210, %v1241
    %v1243 = vand.u32 %v1242, 4294901760
    %1244 = vmatpush.msra.mxu0 %v1243
    %v1245 = vand.u32 %v208, 4294901760
    %v1246 = vsub.f32 %v208, %v1245
    %v1247 = vand.u32 %v1246, 4294901760
    %1248 = vmatpush.msra.mxu0 %v1247
    %v1249 = vand.u32 %v206, 4294901760
    %v1250 = vsub.f32 %v206, %v1249
    %v1251 = vand.u32 %v1250, 4294901760
    %1252 = vmatpush.msra.mxu0 %v1251
    %v1253 = vand.u32 %v204, 4294901760
    %v1254 = vsub.f32 %v204, %v1253
    %v1255 = vand.u32 %v1254, 4294901760
    %1256 = vmatpush.msra.mxu0 %v1255
    %v1257 = vand.u32 %v272, 4294901760
    %1258 = vmatmul.f32.gmra.mxu0 %v1257
    %v1259 = vpop.f32.mrf.mxu0
    %v1260 = vadd.f32 %v1191, %v1259
    %1261 = vdwg.mxu0
    %v1262 = vand.u32 %v234, 4294901760
    %1263 = vmatpush.msra.mxu0 %v1262
    %v1264 = vand.u32 %v232, 4294901760
    %1265 = vmatpush.msra.mxu0 %v1264
    %v1266 = vand.u32 %v230, 4294901760
    %1267 = vmatpush.msra.mxu0 %v1266
    %v1268 = vand.u32 %v228, 4294901760
    %1269 = vmatpush.msra.mxu0 %v1268
    %v1270 = vand.u32 %v226, 4294901760
    %1271 = vmatpush.msra.mxu0 %v1270
    %v1272 = vand.u32 %v224, 4294901760
    %1273 = vmatpush.msra.mxu0 %v1272
    %v1274 = vand.u32 %v222, 4294901760
    %1275 = vmatpush.msra.mxu0 %v1274
    %v1276 = vand.u32 %v220, 4294901760
    %1277 = vmatpush.msra.mxu0 %v1276
    %v1278 = vand.u32 %v218, 4294901760
    %1279 = vmatpush.msra.mxu0 %v1278
    %v1280 = vand.u32 %v216, 4294901760
    %1281 = vmatpush.msra.mxu0 %v1280
    %v1282 = vand.u32 %v214, 4294901760
    %1283 = vmatpush.msra.mxu0 %v1282
    %v1284 = vand.u32 %v212, 4294901760
    %1285 = vmatpush.msra.mxu0 %v1284
    %v1286 = vand.u32 %v210, 4294901760
    %1287 = vmatpush.msra.mxu0 %v1286
    %v1288 = vand.u32 %v208, 4294901760
    %1289 = vmatpush.msra.mxu0 %v1288
    %v1290 = vand.u32 %v206, 4294901760
    %1291 = vmatpush.msra.mxu0 %v1290
    %v1292 = vand.u32 %v204, 4294901760
    %1293 = vmatpush.msra.mxu0 %v1292
    %v1294 = vand.u32 %v272, 4294901760
    %1295 = vmatmul.f32.gmra.mxu0 %v1294
    %v1296 = vpop.f32.mrf.mxu0
    %v1297 = vadd.f32 %v1260, %v1296
    %1298 = vdwg.mxu0
    %v1299 = vand.u32 %v266, 4294901760
    %1300 = vmatpush.msra.mxu0 %v1299
    %v1301 = vand.u32 %v264, 4294901760
    %1302 = vmatpush.msra.mxu0 %v1301
    %v1303 = vand.u32 %v262, 4294901760
    %1304 = vmatpush.msra.mxu0 %v1303
    %v1305 = vand.u32 %v260, 4294901760
    %1306 = vmatpush.msra.mxu0 %v1305
    %v1307 = vand.u32 %v258, 4294901760
    %1308 = vmatpush.msra.mxu0 %v1307
    %v1309 = vand.u32 %v256, 4294901760
    %1310 = vmatpush.msra.mxu0 %v1309
    %v1311 = vand.u32 %v254, 4294901760
    %1312 = vmatpush.msra.mxu0 %v1311
    %v1313 = vand.u32 %v252, 4294901760
    %1314 = vmatpush.msra.mxu0 %v1313
    %v1315 = vand.u32 %v250, 4294901760
    %1316 = vmatpush.msra.mxu0 %v1315
    %v1317 = vand.u32 %v248, 4294901760
    %1318 = vmatpush.msra.mxu0 %v1317
    %v1319 = vand.u32 %v246, 4294901760
    %1320 = vmatpush.msra.mxu0 %v1319
    %v1321 = vand.u32 %v244, 4294901760
    %1322 = vmatpush.msra.mxu0 %v1321
    %v1323 = vand.u32 %v242, 4294901760
    %1324 = vmatpush.msra.mxu0 %v1323
    %v1325 = vand.u32 %v240, 4294901760
    %1326 = vmatpush.msra.mxu0 %v1325
    %v1327 = vand.u32 %v238, 4294901760
    %1328 = vmatpush.msra.mxu0 %v1327
    %v1329 = vand.u32 %v236, 4294901760
    %1330 = vmatpush.msra.mxu0 %v1329
    %v1331 = vand.u32 %v273, 4294901760
    %v1332 = vsub.f32 %v273, %v1331
    %v1333 = vand.u32 %v1332, 4294901760
    %v1334 = vsub.f32 %v1332, %v1333
    %v1335 = vand.u32 %v1334, 4294901760
    %1336 = vmatmul.f32.gmra.mxu0 %v1335
    %v1337 = vpop.f32.mrf.mxu0
    %v1338 = vadd.f32 %v1297, %v1337
    %1339 = vdwg.mxu0
    %v1340 = vand.u32 %v266, 4294901760
    %v1341 = vsub.f32 %v266, %v1340
    %v1342 = vand.u32 %v1341, 4294901760
    %v1343 = vsub.f32 %v1341, %v1342
    %v1344 = vand.u32 %v1343, 4294901760
    %1345 = vmatpush.msra.mxu0 %v1344
    %v1346 = vand.u32 %v264, 4294901760
    %v1347 = vsub.f32 %v264, %v1346
    %v1348 = vand.u32 %v1347, 4294901760
    %v1349 = vsub.f32 %v1347, %v1348
    %v1350 = vand.u32 %v1349, 4294901760
    %1351 = vmatpush.msra.mxu0 %v1350
    %v1352 = vand.u32 %v262, 4294901760
    %v1353 = vsub.f32 %v262, %v1352
    %v1354 = vand.u32 %v1353, 4294901760
    %v1355 = vsub.f32 %v1353, %v1354
    %v1356 = vand.u32 %v1355, 4294901760
    %1357 = vmatpush.msra.mxu0 %v1356
    %v1358 = vand.u32 %v260, 4294901760
    %v1359 = vsub.f32 %v260, %v1358
    %v1360 = vand.u32 %v1359, 4294901760
    %v1361 = vsub.f32 %v1359, %v1360
    %v1362 = vand.u32 %v1361, 4294901760
    %1363 = vmatpush.msra.mxu0 %v1362
    %v1364 = vand.u32 %v258, 4294901760
    %v1365 = vsub.f32 %v258, %v1364
    %v1366 = vand.u32 %v1365, 4294901760
    %v1367 = vsub.f32 %v1365, %v1366
    %v1368 = vand.u32 %v1367, 4294901760
    %1369 = vmatpush.msra.mxu0 %v1368
    %v1370 = vand.u32 %v256, 4294901760
    %v1371 = vsub.f32 %v256, %v1370
    %v1372 = vand.u32 %v1371, 4294901760
    %v1373 = vsub.f32 %v1371, %v1372
    %v1374 = vand.u32 %v1373, 4294901760
    %1375 = vmatpush.msra.mxu0 %v1374
    %v1376 = vand.u32 %v254, 4294901760
    %v1377 = vsub.f32 %v254, %v1376
    %v1378 = vand.u32 %v1377, 4294901760
    %v1379 = vsub.f32 %v1377, %v1378
    %v1380 = vand.u32 %v1379, 4294901760
    %1381 = vmatpush.msra.mxu0 %v1380
    %v1382 = vand.u32 %v252, 4294901760
    %v1383 = vsub.f32 %v252, %v1382
    %v1384 = vand.u32 %v1383, 4294901760
    %v1385 = vsub.f32 %v1383, %v1384
    %v1386 = vand.u32 %v1385, 4294901760
    %1387 = vmatpush.msra.mxu0 %v1386
    %v1388 = vand.u32 %v250, 4294901760
    %v1389 = vsub.f32 %v250, %v1388
    %v1390 = vand.u32 %v1389, 4294901760
    %v1391 = vsub.f32 %v1389, %v1390
    %v1392 = vand.u32 %v1391, 4294901760
    %1393 = vmatpush.msra.mxu0 %v1392
    %v1394 = vand.u32 %v248, 4294901760
    %v1395 = vsub.f32 %v248, %v1394
    %v1396 = vand.u32 %v1395, 4294901760
    %v1397 = vsub.f32 %v1395, %v1396
    %v1398 = vand.u32 %v1397, 4294901760
    %1399 = vmatpush.msra.mxu0 %v1398
    %v1400 = vand.u32 %v246, 4294901760
    %v1401 = vsub.f32 %v246, %v1400
    %v1402 = vand.u32 %v1401, 4294901760
    %v1403 = vsub.f32 %v1401, %v1402
    %v1404 = vand.u32 %v1403, 4294901760
    %1405 = vmatpush.msra.mxu0 %v1404
    %v1406 = vand.u32 %v244, 4294901760
    %v1407 = vsub.f32 %v244, %v1406
    %v1408 = vand.u32 %v1407, 4294901760
    %v1409 = vsub.f32 %v1407, %v1408
    %v1410 = vand.u32 %v1409, 4294901760
    %1411 = vmatpush.msra.mxu0 %v1410
    %v1412 = vand.u32 %v242, 4294901760
    %v1413 = vsub.f32 %v242, %v1412
    %v1414 = vand.u32 %v1413, 4294901760
    %v1415 = vsub.f32 %v1413, %v1414
    %v1416 = vand.u32 %v1415, 4294901760
    %1417 = vmatpush.msra.mxu0 %v1416
    %v1418 = vand.u32 %v240, 4294901760
    %v1419 = vsub.f32 %v240, %v1418
    %v1420 = vand.u32 %v1419, 4294901760
    %v1421 = vsub.f32 %v1419, %v1420
    %v1422 = vand.u32 %v1421, 4294901760
    %1423 = vmatpush.msra.mxu0 %v1422
    %v1424 = vand.u32 %v238, 4294901760
    %v1425 = vsub.f32 %v238, %v1424
    %v1426 = vand.u32 %v1425, 4294901760
    %v1427 = vsub.f32 %v1425, %v1426
    %v1428 = vand.u32 %v1427, 4294901760
    %1429 = vmatpush.msra.mxu0 %v1428
    %v1430 = vand.u32 %v236, 4294901760
    %v1431 = vsub.f32 %v236, %v1430
    %v1432 = vand.u32 %v1431, 4294901760
    %v1433 = vsub.f32 %v1431, %v1432
    %v1434 = vand.u32 %v1433, 4294901760
    %1435 = vmatpush.msra.mxu0 %v1434
    %v1436 = vand.u32 %v273, 4294901760
    %1437 = vmatmul.f32.gmra.mxu0 %v1436
    %v1438 = vpop.f32.mrf.mxu0
    %v1439 = vadd.f32 %v1338, %v1438
    %1440 = vdwg.mxu0
    %v1441 = vand.u32 %v266, 4294901760
    %v1442 = vsub.f32 %v266, %v1441
    %1443 = vmatpush.msra.mxu0 %v1442
    %v1444 = vand.u32 %v264, 4294901760
    %v1445 = vsub.f32 %v264, %v1444
    %1446 = vmatpush.msra.mxu0 %v1445
    %v1447 = vand.u32 %v262, 4294901760
    %v1448 = vsub.f32 %v262, %v1447
    %1449 = vmatpush.msra.mxu0 %v1448
    %v1450 = vand.u32 %v260, 4294901760
    %v1451 = vsub.f32 %v260, %v1450
    %1452 = vmatpush.msra.mxu0 %v1451
    %v1453 = vand.u32 %v258, 4294901760
    %v1454 = vsub.f32 %v258, %v1453
    %1455 = vmatpush.msra.mxu0 %v1454
    %v1456 = vand.u32 %v256, 4294901760
    %v1457 = vsub.f32 %v256, %v1456
    %1458 = vmatpush.msra.mxu0 %v1457
    %v1459 = vand.u32 %v254, 4294901760
    %v1460 = vsub.f32 %v254, %v1459
    %1461 = vmatpush.msra.mxu0 %v1460
    %v1462 = vand.u32 %v252, 4294901760
    %v1463 = vsub.f32 %v252, %v1462
    %1464 = vmatpush.msra.mxu0 %v1463
    %v1465 = vand.u32 %v250, 4294901760
    %v1466 = vsub.f32 %v250, %v1465
    %1467 = vmatpush.msra.mxu0 %v1466
    %v1468 = vand.u32 %v248, 4294901760
    %v1469 = vsub.f32 %v248, %v1468
    %1470 = vmatpush.msra.mxu0 %v1469
    %v1471 = vand.u32 %v246, 4294901760
    %v1472 = vsub.f32 %v246, %v1471
    %1473 = vmatpush.msra.mxu0 %v1472
    %v1474 = vand.u32 %v244, 4294901760
    %v1475 = vsub.f32 %v244, %v1474
    %1476 = vmatpush.msra.mxu0 %v1475
    %v1477 = vand.u32 %v242, 4294901760
    %v1478 = vsub.f32 %v242, %v1477
    %1479 = vmatpush.msra.mxu0 %v1478
    %v1480 = vand.u32 %v240, 4294901760
    %v1481 = vsub.f32 %v240, %v1480
    %1482 = vmatpush.msra.mxu0 %v1481
    %v1483 = vand.u32 %v238, 4294901760
    %v1484 = vsub.f32 %v238, %v1483
    %1485 = vmatpush.msra.mxu0 %v1484
    %v1486 = vand.u32 %v236, 4294901760
    %v1487 = vsub.f32 %v236, %v1486
    %1488 = vmatpush.msra.mxu0 %v1487
    %v1489 = vand.u32 %v273, 4294901760
    %v1490 = vsub.f32 %v273, %v1489
    %1491 = vmatmul.f32.gmra.mxu0 %v1490
    %v1492 = vpop.f32.mrf.mxu0
    %v1493 = vadd.f32 %v1439, %v1492
    %1494 = vdwg.mxu0
    %v1495 = vand.u32 %v266, 4294901760
    %1496 = vmatpush.msra.mxu0 %v1495
    %v1497 = vand.u32 %v264, 4294901760
    %1498 = vmatpush.msra.mxu0 %v1497
    %v1499 = vand.u32 %v262, 4294901760
    %1500 = vmatpush.msra.mxu0 %v1499
    %v1501 = vand.u32 %v260, 4294901760
    %1502 = vmatpush.msra.mxu0 %v1501
    %v1503 = vand.u32 %v258, 4294901760
    %1504 = vmatpush.msra.mxu0 %v1503
    %v1505 = vand.u32 %v256, 4294901760
    %1506 = vmatpush.msra.mxu0 %v1505
    %v1507 = vand.u32 %v254, 4294901760
    %1508 = vmatpush.msra.mxu0 %v1507
    %v1509 = vand.u32 %v252, 4294901760
    %1510 = vmatpush.msra.mxu0 %v1509
    %v1511 = vand.u32 %v250, 4294901760
    %1512 = vmatpush.msra.mxu0 %v1511
    %v1513 = vand.u32 %v248, 4294901760
    %1514 = vmatpush.msra.mxu0 %v1513
    %v1515 = vand.u32 %v246, 4294901760
    %1516 = vmatpush.msra.mxu0 %v1515
    %v1517 = vand.u32 %v244, 4294901760
    %1518 = vmatpush.msra.mxu0 %v1517
    %v1519 = vand.u32 %v242, 4294901760
    %1520 = vmatpush.msra.mxu0 %v1519
    %v1521 = vand.u32 %v240, 4294901760
    %1522 = vmatpush.msra.mxu0 %v1521
    %v1523 = vand.u32 %v238, 4294901760
    %1524 = vmatpush.msra.mxu0 %v1523
    %v1525 = vand.u32 %v236, 4294901760
    %1526 = vmatpush.msra.mxu0 %v1525
    %v1527 = vand.u32 %v273, 4294901760
    %v1528 = vsub.f32 %v273, %v1527
    %v1529 = vand.u32 %v1528, 4294901760
    %1530 = vmatmul.f32.gmra.mxu0 %v1529
    %v1531 = vpop.f32.mrf.mxu0
    %v1532 = vadd.f32 %v1493, %v1531
    %1533 = vdwg.mxu0
    %v1534 = vand.u32 %v266, 4294901760
    %v1535 = vsub.f32 %v266, %v1534
    %v1536 = vand.u32 %v1535, 4294901760
    %1537 = vmatpush.msra.mxu0 %v1536
    %v1538 = vand.u32 %v264, 4294901760
    %v1539 = vsub.f32 %v264, %v1538
    %v1540 = vand.u32 %v1539, 4294901760
    %1541 = vmatpush.msra.mxu0 %v1540
    %v1542 = vand.u32 %v262, 4294901760
    %v1543 = vsub.f32 %v262, %v1542
    %v1544 = vand.u32 %v1543, 4294901760
    %1545 = vmatpush.msra.mxu0 %v1544
    %v1546 = vand.u32 %v260, 4294901760
    %v1547 = vsub.f32 %v260, %v1546
    %v1548 = vand.u32 %v1547, 4294901760
    %1549 = vmatpush.msra.mxu0 %v1548
    %v1550 = vand.u32 %v258, 4294901760
    %v1551 = vsub.f32 %v258, %v1550
    %v1552 = vand.u32 %v1551, 4294901760
    %1553 = vmatpush.msra.mxu0 %v1552
    %v1554 = vand.u32 %v256, 4294901760
    %v1555 = vsub.f32 %v256, %v1554
    %v1556 = vand.u32 %v1555, 4294901760
    %1557 = vmatpush.msra.mxu0 %v1556
    %v1558 = vand.u32 %v254, 4294901760
    %v1559 = vsub.f32 %v254, %v1558
    %v1560 = vand.u32 %v1559, 4294901760
    %1561 = vmatpush.msra.mxu0 %v1560
    %v1562 = vand.u32 %v252, 4294901760
    %v1563 = vsub.f32 %v252, %v1562
    %v1564 = vand.u32 %v1563, 4294901760
    %1565 = vmatpush.msra.mxu0 %v1564
    %v1566 = vand.u32 %v250, 4294901760
    %v1567 = vsub.f32 %v250, %v1566
    %v1568 = vand.u32 %v1567, 4294901760
    %1569 = vmatpush.msra.mxu0 %v1568
    %v1570 = vand.u32 %v248, 4294901760
    %v1571 = vsub.f32 %v248, %v1570
    %v1572 = vand.u32 %v1571, 4294901760
    %1573 = vmatpush.msra.mxu0 %v1572
    %v1574 = vand.u32 %v246, 4294901760
    %v1575 = vsub.f32 %v246, %v1574
    %v1576 = vand.u32 %v1575, 4294901760
    %1577 = vmatpush.msra.mxu0 %v1576
    %v1578 = vand.u32 %v244, 4294901760
    %v1579 = vsub.f32 %v244, %v1578
    %v1580 = vand.u32 %v1579, 4294901760
    %1581 = vmatpush.msra.mxu0 %v1580
    %v1582 = vand.u32 %v242, 4294901760
    %v1583 = vsub.f32 %v242, %v1582
    %v1584 = vand.u32 %v1583, 4294901760
    %1585 = vmatpush.msra.mxu0 %v1584
    %v1586 = vand.u32 %v240, 4294901760
    %v1587 = vsub.f32 %v240, %v1586
    %v1588 = vand.u32 %v1587, 4294901760
    %1589 = vmatpush.msra.mxu0 %v1588
    %v1590 = vand.u32 %v238, 4294901760
    %v1591 = vsub.f32 %v238, %v1590
    %v1592 = vand.u32 %v1591, 4294901760
    %1593 = vmatpush.msra.mxu0 %v1592
    %v1594 = vand.u32 %v236, 4294901760
    %v1595 = vsub.f32 %v236, %v1594
    %v1596 = vand.u32 %v1595, 4294901760
    %1597 = vmatpush.msra.mxu0 %v1596
    %v1598 = vand.u32 %v273, 4294901760
    %1599 = vmatmul.f32.gmra.mxu0 %v1598
    %v1600 = vpop.f32.mrf.mxu0
    %v1601 = vadd.f32 %v1532, %v1600
    %1602 = vdwg.mxu0
    %v1603 = vand.u32 %v266, 4294901760
    %1604 = vmatpush.msra.mxu0 %v1603
    %v1605 = vand.u32 %v264, 4294901760
    %1606 = vmatpush.msra.mxu0 %v1605
    %v1607 = vand.u32 %v262, 4294901760
    %1608 = vmatpush.msra.mxu0 %v1607
    %v1609 = vand.u32 %v260, 4294901760
    %1610 = vmatpush.msra.mxu0 %v1609
    %v1611 = vand.u32 %v258, 4294901760
    %1612 = vmatpush.msra.mxu0 %v1611
    %v1613 = vand.u32 %v256, 4294901760
    %1614 = vmatpush.msra.mxu0 %v1613
    %v1615 = vand.u32 %v254, 4294901760
    %1616 = vmatpush.msra.mxu0 %v1615
    %v1617 = vand.u32 %v252, 4294901760
    %1618 = vmatpush.msra.mxu0 %v1617
    %v1619 = vand.u32 %v250, 4294901760
    %1620 = vmatpush.msra.mxu0 %v1619
    %v1621 = vand.u32 %v248, 4294901760
    %1622 = vmatpush.msra.mxu0 %v1621
    %v1623 = vand.u32 %v246, 4294901760
    %1624 = vmatpush.msra.mxu0 %v1623
    %v1625 = vand.u32 %v244, 4294901760
    %1626 = vmatpush.msra.mxu0 %v1625
    %v1627 = vand.u32 %v242, 4294901760
    %1628 = vmatpush.msra.mxu0 %v1627
    %v1629 = vand.u32 %v240, 4294901760
    %1630 = vmatpush.msra.mxu0 %v1629
    %v1631 = vand.u32 %v238, 4294901760
    %1632 = vmatpush.msra.mxu0 %v1631
    %v1633 = vand.u32 %v236, 4294901760
    %1634 = vmatpush.msra.mxu0 %v1633
    %v1635 = vand.u32 %v273, 4294901760
    %1636 = vmatmul.f32.gmra.mxu0 %v1635
    %v1637 = vpop.f32.mrf.mxu0
    %v1638 = vadd.f32 %v1601, %v1637
    %1639 = vdwg.mxu0
    %v1644 = vsel %vm271, %v97, %v95
    %v1645 = vsel %vm271, %v98, %v96
    %v1648 = vand.u32 %v168, 4294901760
    %1649 = vmatpush.msra.mxu0 %v1648
    %v1650 = vand.u32 %v166, 4294901760
    %1651 = vmatpush.msra.mxu0 %v1650
    %v1652 = vand.u32 %v164, 4294901760
    %1653 = vmatpush.msra.mxu0 %v1652
    %v1654 = vand.u32 %v162, 4294901760
    %1655 = vmatpush.msra.mxu0 %v1654
    %v1656 = vand.u32 %v160, 4294901760
    %1657 = vmatpush.msra.mxu0 %v1656
    %v1658 = vand.u32 %v158, 4294901760
    %1659 = vmatpush.msra.mxu0 %v1658
    %v1660 = vand.u32 %v156, 4294901760
    %1661 = vmatpush.msra.mxu0 %v1660
    %v1662 = vand.u32 %v154, 4294901760
    %1663 = vmatpush.msra.mxu0 %v1662
    %v1664 = vand.u32 %v152, 4294901760
    %1665 = vmatpush.msra.mxu0 %v1664
    %v1666 = vand.u32 %v150, 4294901760
    %1667 = vmatpush.msra.mxu0 %v1666
    %v1668 = vand.u32 %v148, 4294901760
    %1669 = vmatpush.msra.mxu0 %v1668
    %v1670 = vand.u32 %v146, 4294901760
    %1671 = vmatpush.msra.mxu0 %v1670
    %v1672 = vand.u32 %v144, 4294901760
    %1673 = vmatpush.msra.mxu0 %v1672
    %v1674 = vand.u32 %v142, 4294901760
    %1675 = vmatpush.msra.mxu0 %v1674
    %v1676 = vand.u32 %v140, 4294901760
    %1677 = vmatpush.msra.mxu0 %v1676
    %v1678 = vand.u32 %v138, 4294901760
    %1679 = vmatpush.msra.mxu0 %v1678
    %v1680 = vand.u32 %v1644, 4294901760
    %v1681 = vsub.f32 %v1644, %v1680
    %v1682 = vand.u32 %v1681, 4294901760
    %v1683 = vsub.f32 %v1681, %v1682
    %v1684 = vand.u32 %v1683, 4294901760
    %1685 = vmatmul.f32.gmra.mxu0 %v1684
    %v1686 = vpop.f32.mrf.mxu0
    %v1687 = vadd.f32 %v956, %v1686
    %1688 = vdwg.mxu0
    %v1689 = vand.u32 %v168, 4294901760
    %v1690 = vsub.f32 %v168, %v1689
    %v1691 = vand.u32 %v1690, 4294901760
    %v1692 = vsub.f32 %v1690, %v1691
    %v1693 = vand.u32 %v1692, 4294901760
    %1694 = vmatpush.msra.mxu0 %v1693
    %v1695 = vand.u32 %v166, 4294901760
    %v1696 = vsub.f32 %v166, %v1695
    %v1697 = vand.u32 %v1696, 4294901760
    %v1698 = vsub.f32 %v1696, %v1697
    %v1699 = vand.u32 %v1698, 4294901760
    %1700 = vmatpush.msra.mxu0 %v1699
    %v1701 = vand.u32 %v164, 4294901760
    %v1702 = vsub.f32 %v164, %v1701
    %v1703 = vand.u32 %v1702, 4294901760
    %v1704 = vsub.f32 %v1702, %v1703
    %v1705 = vand.u32 %v1704, 4294901760
    %1706 = vmatpush.msra.mxu0 %v1705
    %v1707 = vand.u32 %v162, 4294901760
    %v1708 = vsub.f32 %v162, %v1707
    %v1709 = vand.u32 %v1708, 4294901760
    %v1710 = vsub.f32 %v1708, %v1709
    %v1711 = vand.u32 %v1710, 4294901760
    %1712 = vmatpush.msra.mxu0 %v1711
    %v1713 = vand.u32 %v160, 4294901760
    %v1714 = vsub.f32 %v160, %v1713
    %v1715 = vand.u32 %v1714, 4294901760
    %v1716 = vsub.f32 %v1714, %v1715
    %v1717 = vand.u32 %v1716, 4294901760
    %1718 = vmatpush.msra.mxu0 %v1717
    %v1719 = vand.u32 %v158, 4294901760
    %v1720 = vsub.f32 %v158, %v1719
    %v1721 = vand.u32 %v1720, 4294901760
    %v1722 = vsub.f32 %v1720, %v1721
    %v1723 = vand.u32 %v1722, 4294901760
    %1724 = vmatpush.msra.mxu0 %v1723
    %v1725 = vand.u32 %v156, 4294901760
    %v1726 = vsub.f32 %v156, %v1725
    %v1727 = vand.u32 %v1726, 4294901760
    %v1728 = vsub.f32 %v1726, %v1727
    %v1729 = vand.u32 %v1728, 4294901760
    %1730 = vmatpush.msra.mxu0 %v1729
    %v1731 = vand.u32 %v154, 4294901760
    %v1732 = vsub.f32 %v154, %v1731
    %v1733 = vand.u32 %v1732, 4294901760
    %v1734 = vsub.f32 %v1732, %v1733
    %v1735 = vand.u32 %v1734, 4294901760
    %1736 = vmatpush.msra.mxu0 %v1735
    %v1737 = vand.u32 %v152, 4294901760
    %v1738 = vsub.f32 %v152, %v1737
    %v1739 = vand.u32 %v1738, 4294901760
    %v1740 = vsub.f32 %v1738, %v1739
    %v1741 = vand.u32 %v1740, 4294901760
    %1742 = vmatpush.msra.mxu0 %v1741
    %v1743 = vand.u32 %v150, 4294901760
    %v1744 = vsub.f32 %v150, %v1743
    %v1745 = vand.u32 %v1744, 4294901760
    %v1746 = vsub.f32 %v1744, %v1745
    %v1747 = vand.u32 %v1746, 4294901760
    %1748 = vmatpush.msra.mxu0 %v1747
    %v1749 = vand.u32 %v148, 4294901760
    %v1750 = vsub.f32 %v148, %v1749
    %v1751 = vand.u32 %v1750, 4294901760
    %v1752 = vsub.f32 %v1750, %v1751
    %v1753 = vand.u32 %v1752, 4294901760
    %1754 = vmatpush.msra.mxu0 %v1753
    %v1755 = vand.u32 %v146, 4294901760
    %v1756 = vsub.f32 %v146, %v1755
    %v1757 = vand.u32 %v1756, 4294901760
    %v1758 = vsub.f32 %v1756, %v1757
    %v1759 = vand.u32 %v1758, 4294901760
    %1760 = vmatpush.msra.mxu0 %v1759
    %v1761 = vand.u32 %v144, 4294901760
    %v1762 = vsub.f32 %v144, %v1761
    %v1763 = vand.u32 %v1762, 4294901760
    %v1764 = vsub.f32 %v1762, %v1763
    %v1765 = vand.u32 %v1764, 4294901760
    %1766 = vmatpush.msra.mxu0 %v1765
    %v1767 = vand.u32 %v142, 4294901760
    %v1768 = vsub.f32 %v142, %v1767
    %v1769 = vand.u32 %v1768, 4294901760
    %v1770 = vsub.f32 %v1768, %v1769
    %v1771 = vand.u32 %v1770, 4294901760
    %1772 = vmatpush.msra.mxu0 %v1771
    %v1773 = vand.u32 %v140, 4294901760
    %v1774 = vsub.f32 %v140, %v1773
    %v1775 = vand.u32 %v1774, 4294901760
    %v1776 = vsub.f32 %v1774, %v1775
    %v1777 = vand.u32 %v1776, 4294901760
    %1778 = vmatpush.msra.mxu0 %v1777
    %v1779 = vand.u32 %v138, 4294901760
    %v1780 = vsub.f32 %v138, %v1779
    %v1781 = vand.u32 %v1780, 4294901760
    %v1782 = vsub.f32 %v1780, %v1781
    %v1783 = vand.u32 %v1782, 4294901760
    %1784 = vmatpush.msra.mxu0 %v1783
    %v1785 = vand.u32 %v1644, 4294901760
    %1786 = vmatmul.f32.gmra.mxu0 %v1785
    %v1787 = vpop.f32.mrf.mxu0
    %v1788 = vadd.f32 %v1687, %v1787
    %1789 = vdwg.mxu0
    %v1790 = vand.u32 %v168, 4294901760
    %v1791 = vsub.f32 %v168, %v1790
    %1792 = vmatpush.msra.mxu0 %v1791
    %v1793 = vand.u32 %v166, 4294901760
    %v1794 = vsub.f32 %v166, %v1793
    %1795 = vmatpush.msra.mxu0 %v1794
    %v1796 = vand.u32 %v164, 4294901760
    %v1797 = vsub.f32 %v164, %v1796
    %1798 = vmatpush.msra.mxu0 %v1797
    %v1799 = vand.u32 %v162, 4294901760
    %v1800 = vsub.f32 %v162, %v1799
    %1801 = vmatpush.msra.mxu0 %v1800
    %v1802 = vand.u32 %v160, 4294901760
    %v1803 = vsub.f32 %v160, %v1802
    %1804 = vmatpush.msra.mxu0 %v1803
    %v1805 = vand.u32 %v158, 4294901760
    %v1806 = vsub.f32 %v158, %v1805
    %1807 = vmatpush.msra.mxu0 %v1806
    %v1808 = vand.u32 %v156, 4294901760
    %v1809 = vsub.f32 %v156, %v1808
    %1810 = vmatpush.msra.mxu0 %v1809
    %v1811 = vand.u32 %v154, 4294901760
    %v1812 = vsub.f32 %v154, %v1811
    %1813 = vmatpush.msra.mxu0 %v1812
    %v1814 = vand.u32 %v152, 4294901760
    %v1815 = vsub.f32 %v152, %v1814
    %1816 = vmatpush.msra.mxu0 %v1815
    %v1817 = vand.u32 %v150, 4294901760
    %v1818 = vsub.f32 %v150, %v1817
    %1819 = vmatpush.msra.mxu0 %v1818
    %v1820 = vand.u32 %v148, 4294901760
    %v1821 = vsub.f32 %v148, %v1820
    %1822 = vmatpush.msra.mxu0 %v1821
    %v1823 = vand.u32 %v146, 4294901760
    %v1824 = vsub.f32 %v146, %v1823
    %1825 = vmatpush.msra.mxu0 %v1824
    %v1826 = vand.u32 %v144, 4294901760
    %v1827 = vsub.f32 %v144, %v1826
    %1828 = vmatpush.msra.mxu0 %v1827
    %v1829 = vand.u32 %v142, 4294901760
    %v1830 = vsub.f32 %v142, %v1829
    %1831 = vmatpush.msra.mxu0 %v1830
    %v1832 = vand.u32 %v140, 4294901760
    %v1833 = vsub.f32 %v140, %v1832
    %1834 = vmatpush.msra.mxu0 %v1833
    %v1835 = vand.u32 %v138, 4294901760
    %v1836 = vsub.f32 %v138, %v1835
    %1837 = vmatpush.msra.mxu0 %v1836
    %v1838 = vand.u32 %v1644, 4294901760
    %v1839 = vsub.f32 %v1644, %v1838
    %1840 = vmatmul.f32.gmra.mxu0 %v1839
    %v1841 = vpop.f32.mrf.mxu0
    %v1842 = vadd.f32 %v1788, %v1841
    %1843 = vdwg.mxu0
    %v1844 = vand.u32 %v168, 4294901760
    %1845 = vmatpush.msra.mxu0 %v1844
    %v1846 = vand.u32 %v166, 4294901760
    %1847 = vmatpush.msra.mxu0 %v1846
    %v1848 = vand.u32 %v164, 4294901760
    %1849 = vmatpush.msra.mxu0 %v1848
    %v1850 = vand.u32 %v162, 4294901760
    %1851 = vmatpush.msra.mxu0 %v1850
    %v1852 = vand.u32 %v160, 4294901760
    %1853 = vmatpush.msra.mxu0 %v1852
    %v1854 = vand.u32 %v158, 4294901760
    %1855 = vmatpush.msra.mxu0 %v1854
    %v1856 = vand.u32 %v156, 4294901760
    %1857 = vmatpush.msra.mxu0 %v1856
    %v1858 = vand.u32 %v154, 4294901760
    %1859 = vmatpush.msra.mxu0 %v1858
    %v1860 = vand.u32 %v152, 4294901760
    %1861 = vmatpush.msra.mxu0 %v1860
    %v1862 = vand.u32 %v150, 4294901760
    %1863 = vmatpush.msra.mxu0 %v1862
    %v1864 = vand.u32 %v148, 4294901760
    %1865 = vmatpush.msra.mxu0 %v1864
    %v1866 = vand.u32 %v146, 4294901760
    %1867 = vmatpush.msra.mxu0 %v1866
    %v1868 = vand.u32 %v144, 4294901760
    %1869 = vmatpush.msra.mxu0 %v1868
    %v1870 = vand.u32 %v142, 4294901760
    %1871 = vmatpush.msra.mxu0 %v1870
    %v1872 = vand.u32 %v140, 4294901760
    %1873 = vmatpush.msra.mxu0 %v1872
    %v1874 = vand.u32 %v138, 4294901760
    %1875 = vmatpush.msra.mxu0 %v1874
    %v1876 = vand.u32 %v1644, 4294901760
    %v1877 = vsub.f32 %v1644, %v1876
    %v1878 = vand.u32 %v1877, 4294901760
    %1879 = vmatmul.f32.gmra.mxu0 %v1878
    %v1880 = vpop.f32.mrf.mxu0
    %v1881 = vadd.f32 %v1842, %v1880
    %1882 = vdwg.mxu0
    %v1883 = vand.u32 %v168, 4294901760
    %v1884 = vsub.f32 %v168, %v1883
    %v1885 = vand.u32 %v1884, 4294901760
    %1886 = vmatpush.msra.mxu0 %v1885
    %v1887 = vand.u32 %v166, 4294901760
    %v1888 = vsub.f32 %v166, %v1887
    %v1889 = vand.u32 %v1888, 4294901760
    %1890 = vmatpush.msra.mxu0 %v1889
    %v1891 = vand.u32 %v164, 4294901760
    %v1892 = vsub.f32 %v164, %v1891
    %v1893 = vand.u32 %v1892, 4294901760
    %1894 = vmatpush.msra.mxu0 %v1893
    %v1895 = vand.u32 %v162, 4294901760
    %v1896 = vsub.f32 %v162, %v1895
    %v1897 = vand.u32 %v1896, 4294901760
    %1898 = vmatpush.msra.mxu0 %v1897
    %v1899 = vand.u32 %v160, 4294901760
    %v1900 = vsub.f32 %v160, %v1899
    %v1901 = vand.u32 %v1900, 4294901760
    %1902 = vmatpush.msra.mxu0 %v1901
    %v1903 = vand.u32 %v158, 4294901760
    %v1904 = vsub.f32 %v158, %v1903
    %v1905 = vand.u32 %v1904, 4294901760
    %1906 = vmatpush.msra.mxu0 %v1905
    %v1907 = vand.u32 %v156, 4294901760
    %v1908 = vsub.f32 %v156, %v1907
    %v1909 = vand.u32 %v1908, 4294901760
    %1910 = vmatpush.msra.mxu0 %v1909
    %v1911 = vand.u32 %v154, 4294901760
    %v1912 = vsub.f32 %v154, %v1911
    %v1913 = vand.u32 %v1912, 4294901760
    %1914 = vmatpush.msra.mxu0 %v1913
    %v1915 = vand.u32 %v152, 4294901760
    %v1916 = vsub.f32 %v152, %v1915
    %v1917 = vand.u32 %v1916, 4294901760
    %1918 = vmatpush.msra.mxu0 %v1917
    %v1919 = vand.u32 %v150, 4294901760
    %v1920 = vsub.f32 %v150, %v1919
    %v1921 = vand.u32 %v1920, 4294901760
    %1922 = vmatpush.msra.mxu0 %v1921
    %v1923 = vand.u32 %v148, 4294901760
    %v1924 = vsub.f32 %v148, %v1923
    %v1925 = vand.u32 %v1924, 4294901760
    %1926 = vmatpush.msra.mxu0 %v1925
    %v1927 = vand.u32 %v146, 4294901760
    %v1928 = vsub.f32 %v146, %v1927
    %v1929 = vand.u32 %v1928, 4294901760
    %1930 = vmatpush.msra.mxu0 %v1929
    %v1931 = vand.u32 %v144, 4294901760
    %v1932 = vsub.f32 %v144, %v1931
    %v1933 = vand.u32 %v1932, 4294901760
    %1934 = vmatpush.msra.mxu0 %v1933
    %v1935 = vand.u32 %v142, 4294901760
    %v1936 = vsub.f32 %v142, %v1935
    %v1937 = vand.u32 %v1936, 4294901760
    %1938 = vmatpush.msra.mxu0 %v1937
    %v1939 = vand.u32 %v140, 4294901760
    %v1940 = vsub.f32 %v140, %v1939
    %v1941 = vand.u32 %v1940, 4294901760
    %1942 = vmatpush.msra.mxu0 %v1941
    %v1943 = vand.u32 %v138, 4294901760
    %v1944 = vsub.f32 %v138, %v1943
    %v1945 = vand.u32 %v1944, 4294901760
    %1946 = vmatpush.msra.mxu0 %v1945
    %v1947 = vand.u32 %v1644, 4294901760
    %1948 = vmatmul.f32.gmra.mxu0 %v1947
    %v1949 = vpop.f32.mrf.mxu0
    %v1950 = vadd.f32 %v1881, %v1949
    %1951 = vdwg.mxu0
    %v1952 = vand.u32 %v168, 4294901760
    %1953 = vmatpush.msra.mxu0 %v1952
    %v1954 = vand.u32 %v166, 4294901760
    %1955 = vmatpush.msra.mxu0 %v1954
    %v1956 = vand.u32 %v164, 4294901760
    %1957 = vmatpush.msra.mxu0 %v1956
    %v1958 = vand.u32 %v162, 4294901760
    %1959 = vmatpush.msra.mxu0 %v1958
    %v1960 = vand.u32 %v160, 4294901760
    %1961 = vmatpush.msra.mxu0 %v1960
    %v1962 = vand.u32 %v158, 4294901760
    %1963 = vmatpush.msra.mxu0 %v1962
    %v1964 = vand.u32 %v156, 4294901760
    %1965 = vmatpush.msra.mxu0 %v1964
    %v1966 = vand.u32 %v154, 4294901760
    %1967 = vmatpush.msra.mxu0 %v1966
    %v1968 = vand.u32 %v152, 4294901760
    %1969 = vmatpush.msra.mxu0 %v1968
    %v1970 = vand.u32 %v150, 4294901760
    %1971 = vmatpush.msra.mxu0 %v1970
    %v1972 = vand.u32 %v148, 4294901760
    %1973 = vmatpush.msra.mxu0 %v1972
    %v1974 = vand.u32 %v146, 4294901760
    %1975 = vmatpush.msra.mxu0 %v1974
    %v1976 = vand.u32 %v144, 4294901760
    %1977 = vmatpush.msra.mxu0 %v1976
    %v1978 = vand.u32 %v142, 4294901760
    %1979 = vmatpush.msra.mxu0 %v1978
    %v1980 = vand.u32 %v140, 4294901760
    %1981 = vmatpush.msra.mxu0 %v1980
    %v1982 = vand.u32 %v138, 4294901760
    %1983 = vmatpush.msra.mxu0 %v1982
    %v1984 = vand.u32 %v1644, 4294901760
    %1985 = vmatmul.f32.gmra.mxu0 %v1984
    %v1986 = vpop.f32.mrf.mxu0
    %v1987 = vadd.f32 %v1950, %v1986
    %1988 = vdwg.mxu0
    %v1989 = vand.u32 %v200, 4294901760
    %1990 = vmatpush.msra.mxu0 %v1989
    %v1991 = vand.u32 %v198, 4294901760
    %1992 = vmatpush.msra.mxu0 %v1991
    %v1993 = vand.u32 %v196, 4294901760
    %1994 = vmatpush.msra.mxu0 %v1993
    %v1995 = vand.u32 %v194, 4294901760
    %1996 = vmatpush.msra.mxu0 %v1995
    %v1997 = vand.u32 %v192, 4294901760
    %1998 = vmatpush.msra.mxu0 %v1997
    %v1999 = vand.u32 %v190, 4294901760
    %2000 = vmatpush.msra.mxu0 %v1999
    %v2001 = vand.u32 %v188, 4294901760
    %2002 = vmatpush.msra.mxu0 %v2001
    %v2003 = vand.u32 %v186, 4294901760
    %2004 = vmatpush.msra.mxu0 %v2003
    %v2005 = vand.u32 %v184, 4294901760
    %2006 = vmatpush.msra.mxu0 %v2005
    %v2007 = vand.u32 %v182, 4294901760
    %2008 = vmatpush.msra.mxu0 %v2007
    %v2009 = vand.u32 %v180, 4294901760
    %2010 = vmatpush.msra.mxu0 %v2009
    %v2011 = vand.u32 %v178, 4294901760
    %2012 = vmatpush.msra.mxu0 %v2011
    %v2013 = vand.u32 %v176, 4294901760
    %2014 = vmatpush.msra.mxu0 %v2013
    %v2015 = vand.u32 %v174, 4294901760
    %2016 = vmatpush.msra.mxu0 %v2015
    %v2017 = vand.u32 %v172, 4294901760
    %2018 = vmatpush.msra.mxu0 %v2017
    %v2019 = vand.u32 %v170, 4294901760
    %2020 = vmatpush.msra.mxu0 %v2019
    %v2021 = vand.u32 %v1645, 4294901760
    %v2022 = vsub.f32 %v1645, %v2021
    %v2023 = vand.u32 %v2022, 4294901760
    %v2024 = vsub.f32 %v2022, %v2023
    %v2025 = vand.u32 %v2024, 4294901760
    %2026 = vmatmul.f32.gmra.mxu0 %v2025
    %v2027 = vpop.f32.mrf.mxu0
    %v2028 = vadd.f32 %v1987, %v2027
    %2029 = vdwg.mxu0
    %v2030 = vand.u32 %v200, 4294901760
    %v2031 = vsub.f32 %v200, %v2030
    %v2032 = vand.u32 %v2031, 4294901760
    %v2033 = vsub.f32 %v2031, %v2032
    %v2034 = vand.u32 %v2033, 4294901760
    %2035 = vmatpush.msra.mxu0 %v2034
    %v2036 = vand.u32 %v198, 4294901760
    %v2037 = vsub.f32 %v198, %v2036
    %v2038 = vand.u32 %v2037, 4294901760
    %v2039 = vsub.f32 %v2037, %v2038
    %v2040 = vand.u32 %v2039, 4294901760
    %2041 = vmatpush.msra.mxu0 %v2040
    %v2042 = vand.u32 %v196, 4294901760
    %v2043 = vsub.f32 %v196, %v2042
    %v2044 = vand.u32 %v2043, 4294901760
    %v2045 = vsub.f32 %v2043, %v2044
    %v2046 = vand.u32 %v2045, 4294901760
    %2047 = vmatpush.msra.mxu0 %v2046
    %v2048 = vand.u32 %v194, 4294901760
    %v2049 = vsub.f32 %v194, %v2048
    %v2050 = vand.u32 %v2049, 4294901760
    %v2051 = vsub.f32 %v2049, %v2050
    %v2052 = vand.u32 %v2051, 4294901760
    %2053 = vmatpush.msra.mxu0 %v2052
    %v2054 = vand.u32 %v192, 4294901760
    %v2055 = vsub.f32 %v192, %v2054
    %v2056 = vand.u32 %v2055, 4294901760
    %v2057 = vsub.f32 %v2055, %v2056
    %v2058 = vand.u32 %v2057, 4294901760
    %2059 = vmatpush.msra.mxu0 %v2058
    %v2060 = vand.u32 %v190, 4294901760
    %v2061 = vsub.f32 %v190, %v2060
    %v2062 = vand.u32 %v2061, 4294901760
    %v2063 = vsub.f32 %v2061, %v2062
    %v2064 = vand.u32 %v2063, 4294901760
    %2065 = vmatpush.msra.mxu0 %v2064
    %v2066 = vand.u32 %v188, 4294901760
    %v2067 = vsub.f32 %v188, %v2066
    %v2068 = vand.u32 %v2067, 4294901760
    %v2069 = vsub.f32 %v2067, %v2068
    %v2070 = vand.u32 %v2069, 4294901760
    %2071 = vmatpush.msra.mxu0 %v2070
    %v2072 = vand.u32 %v186, 4294901760
    %v2073 = vsub.f32 %v186, %v2072
    %v2074 = vand.u32 %v2073, 4294901760
    %v2075 = vsub.f32 %v2073, %v2074
    %v2076 = vand.u32 %v2075, 4294901760
    %2077 = vmatpush.msra.mxu0 %v2076
    %v2078 = vand.u32 %v184, 4294901760
    %v2079 = vsub.f32 %v184, %v2078
    %v2080 = vand.u32 %v2079, 4294901760
    %v2081 = vsub.f32 %v2079, %v2080
    %v2082 = vand.u32 %v2081, 4294901760
    %2083 = vmatpush.msra.mxu0 %v2082
    %v2084 = vand.u32 %v182, 4294901760
    %v2085 = vsub.f32 %v182, %v2084
    %v2086 = vand.u32 %v2085, 4294901760
    %v2087 = vsub.f32 %v2085, %v2086
    %v2088 = vand.u32 %v2087, 4294901760
    %2089 = vmatpush.msra.mxu0 %v2088
    %v2090 = vand.u32 %v180, 4294901760
    %v2091 = vsub.f32 %v180, %v2090
    %v2092 = vand.u32 %v2091, 4294901760
    %v2093 = vsub.f32 %v2091, %v2092
    %v2094 = vand.u32 %v2093, 4294901760
    %2095 = vmatpush.msra.mxu0 %v2094
    %v2096 = vand.u32 %v178, 4294901760
    %v2097 = vsub.f32 %v178, %v2096
    %v2098 = vand.u32 %v2097, 4294901760
    %v2099 = vsub.f32 %v2097, %v2098
    %v2100 = vand.u32 %v2099, 4294901760
    %2101 = vmatpush.msra.mxu0 %v2100
    %v2102 = vand.u32 %v176, 4294901760
    %v2103 = vsub.f32 %v176, %v2102
    %v2104 = vand.u32 %v2103, 4294901760
    %v2105 = vsub.f32 %v2103, %v2104
    %v2106 = vand.u32 %v2105, 4294901760
    %2107 = vmatpush.msra.mxu0 %v2106
    %v2108 = vand.u32 %v174, 4294901760
    %v2109 = vsub.f32 %v174, %v2108
    %v2110 = vand.u32 %v2109, 4294901760
    %v2111 = vsub.f32 %v2109, %v2110
    %v2112 = vand.u32 %v2111, 4294901760
    %2113 = vmatpush.msra.mxu0 %v2112
    %v2114 = vand.u32 %v172, 4294901760
    %v2115 = vsub.f32 %v172, %v2114
    %v2116 = vand.u32 %v2115, 4294901760
    %v2117 = vsub.f32 %v2115, %v2116
    %v2118 = vand.u32 %v2117, 4294901760
    %2119 = vmatpush.msra.mxu0 %v2118
    %v2120 = vand.u32 %v170, 4294901760
    %v2121 = vsub.f32 %v170, %v2120
    %v2122 = vand.u32 %v2121, 4294901760
    %v2123 = vsub.f32 %v2121, %v2122
    %v2124 = vand.u32 %v2123, 4294901760
    %2125 = vmatpush.msra.mxu0 %v2124
    %v2126 = vand.u32 %v1645, 4294901760
    %2127 = vmatmul.f32.gmra.mxu0 %v2126
    %v2128 = vpop.f32.mrf.mxu0
    %v2129 = vadd.f32 %v2028, %v2128
    %2130 = vdwg.mxu0
    %v2131 = vand.u32 %v200, 4294901760
    %v2132 = vsub.f32 %v200, %v2131
    %2133 = vmatpush.msra.mxu0 %v2132
    %v2134 = vand.u32 %v198, 4294901760
    %v2135 = vsub.f32 %v198, %v2134
    %2136 = vmatpush.msra.mxu0 %v2135
    %v2137 = vand.u32 %v196, 4294901760
    %v2138 = vsub.f32 %v196, %v2137
    %2139 = vmatpush.msra.mxu0 %v2138
    %v2140 = vand.u32 %v194, 4294901760
    %v2141 = vsub.f32 %v194, %v2140
    %2142 = vmatpush.msra.mxu0 %v2141
    %v2143 = vand.u32 %v192, 4294901760
    %v2144 = vsub.f32 %v192, %v2143
    %2145 = vmatpush.msra.mxu0 %v2144
    %v2146 = vand.u32 %v190, 4294901760
    %v2147 = vsub.f32 %v190, %v2146
    %2148 = vmatpush.msra.mxu0 %v2147
    %v2149 = vand.u32 %v188, 4294901760
    %v2150 = vsub.f32 %v188, %v2149
    %2151 = vmatpush.msra.mxu0 %v2150
    %v2152 = vand.u32 %v186, 4294901760
    %v2153 = vsub.f32 %v186, %v2152
    %2154 = vmatpush.msra.mxu0 %v2153
    %v2155 = vand.u32 %v184, 4294901760
    %v2156 = vsub.f32 %v184, %v2155
    %2157 = vmatpush.msra.mxu0 %v2156
    %v2158 = vand.u32 %v182, 4294901760
    %v2159 = vsub.f32 %v182, %v2158
    %2160 = vmatpush.msra.mxu0 %v2159
    %v2161 = vand.u32 %v180, 4294901760
    %v2162 = vsub.f32 %v180, %v2161
    %2163 = vmatpush.msra.mxu0 %v2162
    %v2164 = vand.u32 %v178, 4294901760
    %v2165 = vsub.f32 %v178, %v2164
    %2166 = vmatpush.msra.mxu0 %v2165
    %v2167 = vand.u32 %v176, 4294901760
    %v2168 = vsub.f32 %v176, %v2167
    %2169 = vmatpush.msra.mxu0 %v2168
    %v2170 = vand.u32 %v174, 4294901760
    %v2171 = vsub.f32 %v174, %v2170
    %2172 = vmatpush.msra.mxu0 %v2171
    %v2173 = vand.u32 %v172, 4294901760
    %v2174 = vsub.f32 %v172, %v2173
    %2175 = vmatpush.msra.mxu0 %v2174
    %v2176 = vand.u32 %v170, 4294901760
    %v2177 = vsub.f32 %v170, %v2176
    %2178 = vmatpush.msra.mxu0 %v2177
    %v2179 = vand.u32 %v1645, 4294901760
    %v2180 = vsub.f32 %v1645, %v2179
    %2181 = vmatmul.f32.gmra.mxu0 %v2180
    %v2182 = vpop.f32.mrf.mxu0
    %v2183 = vadd.f32 %v2129, %v2182
    %2184 = vdwg.mxu0
    %v2185 = vand.u32 %v200, 4294901760
    %2186 = vmatpush.msra.mxu0 %v2185
    %v2187 = vand.u32 %v198, 4294901760
    %2188 = vmatpush.msra.mxu0 %v2187
    %v2189 = vand.u32 %v196, 4294901760
    %2190 = vmatpush.msra.mxu0 %v2189
    %v2191 = vand.u32 %v194, 4294901760
    %2192 = vmatpush.msra.mxu0 %v2191
    %v2193 = vand.u32 %v192, 4294901760
    %2194 = vmatpush.msra.mxu0 %v2193
    %v2195 = vand.u32 %v190, 4294901760
    %2196 = vmatpush.msra.mxu0 %v2195
    %v2197 = vand.u32 %v188, 4294901760
    %2198 = vmatpush.msra.mxu0 %v2197
    %v2199 = vand.u32 %v186, 4294901760
    %2200 = vmatpush.msra.mxu0 %v2199
    %v2201 = vand.u32 %v184, 4294901760
    %2202 = vmatpush.msra.mxu0 %v2201
    %v2203 = vand.u32 %v182, 4294901760
    %2204 = vmatpush.msra.mxu0 %v2203
    %v2205 = vand.u32 %v180, 4294901760
    %2206 = vmatpush.msra.mxu0 %v2205
    %v2207 = vand.u32 %v178, 4294901760
    %2208 = vmatpush.msra.mxu0 %v2207
    %v2209 = vand.u32 %v176, 4294901760
    %2210 = vmatpush.msra.mxu0 %v2209
    %v2211 = vand.u32 %v174, 4294901760
    %2212 = vmatpush.msra.mxu0 %v2211
    %v2213 = vand.u32 %v172, 4294901760
    %2214 = vmatpush.msra.mxu0 %v2213
    %v2215 = vand.u32 %v170, 4294901760
    %2216 = vmatpush.msra.mxu0 %v2215
    %v2217 = vand.u32 %v1645, 4294901760
    %v2218 = vsub.f32 %v1645, %v2217
    %v2219 = vand.u32 %v2218, 4294901760
    %2220 = vmatmul.f32.gmra.mxu0 %v2219
    %v2221 = vpop.f32.mrf.mxu0
    %v2222 = vadd.f32 %v2183, %v2221
    %2223 = vdwg.mxu0
    %v2224 = vand.u32 %v200, 4294901760
    %v2225 = vsub.f32 %v200, %v2224
    %v2226 = vand.u32 %v2225, 4294901760
    %2227 = vmatpush.msra.mxu0 %v2226
    %v2228 = vand.u32 %v198, 4294901760
    %v2229 = vsub.f32 %v198, %v2228
    %v2230 = vand.u32 %v2229, 4294901760
    %2231 = vmatpush.msra.mxu0 %v2230
    %v2232 = vand.u32 %v196, 4294901760
    %v2233 = vsub.f32 %v196, %v2232
    %v2234 = vand.u32 %v2233, 4294901760
    %2235 = vmatpush.msra.mxu0 %v2234
    %v2236 = vand.u32 %v194, 4294901760
    %v2237 = vsub.f32 %v194, %v2236
    %v2238 = vand.u32 %v2237, 4294901760
    %2239 = vmatpush.msra.mxu0 %v2238
    %v2240 = vand.u32 %v192, 4294901760
    %v2241 = vsub.f32 %v192, %v2240
    %v2242 = vand.u32 %v2241, 4294901760
    %2243 = vmatpush.msra.mxu0 %v2242
    %v2244 = vand.u32 %v190, 4294901760
    %v2245 = vsub.f32 %v190, %v2244
    %v2246 = vand.u32 %v2245, 4294901760
    %2247 = vmatpush.msra.mxu0 %v2246
    %v2248 = vand.u32 %v188, 4294901760
    %v2249 = vsub.f32 %v188, %v2248
    %v2250 = vand.u32 %v2249, 4294901760
    %2251 = vmatpush.msra.mxu0 %v2250
    %v2252 = vand.u32 %v186, 4294901760
    %v2253 = vsub.f32 %v186, %v2252
    %v2254 = vand.u32 %v2253, 4294901760
    %2255 = vmatpush.msra.mxu0 %v2254
    %v2256 = vand.u32 %v184, 4294901760
    %v2257 = vsub.f32 %v184, %v2256
    %v2258 = vand.u32 %v2257, 4294901760
    %2259 = vmatpush.msra.mxu0 %v2258
    %v2260 = vand.u32 %v182, 4294901760
    %v2261 = vsub.f32 %v182, %v2260
    %v2262 = vand.u32 %v2261, 4294901760
    %2263 = vmatpush.msra.mxu0 %v2262
    %v2264 = vand.u32 %v180, 4294901760
    %v2265 = vsub.f32 %v180, %v2264
    %v2266 = vand.u32 %v2265, 4294901760
    %2267 = vmatpush.msra.mxu0 %v2266
    %v2268 = vand.u32 %v178, 4294901760
    %v2269 = vsub.f32 %v178, %v2268
    %v2270 = vand.u32 %v2269, 4294901760
    %2271 = vmatpush.msra.mxu0 %v2270
    %v2272 = vand.u32 %v176, 4294901760
    %v2273 = vsub.f32 %v176, %v2272
    %v2274 = vand.u32 %v2273, 4294901760
    %2275 = vmatpush.msra.mxu0 %v2274
    %v2276 = vand.u32 %v174, 4294901760
    %v2277 = vsub.f32 %v174, %v2276
    %v2278 = vand.u32 %v2277, 4294901760
    %2279 = vmatpush.msra.mxu0 %v2278
    %v2280 = vand.u32 %v172, 4294901760
    %v2281 = vsub.f32 %v172, %v2280
    %v2282 = vand.u32 %v2281, 4294901760
    %2283 = vmatpush.msra.mxu0 %v2282
    %v2284 = vand.u32 %v170, 4294901760
    %v2285 = vsub.f32 %v170, %v2284
    %v2286 = vand.u32 %v2285, 4294901760
    %2287 = vmatpush.msra.mxu0 %v2286
    %v2288 = vand.u32 %v1645, 4294901760
    %2289 = vmatmul.f32.gmra.mxu0 %v2288
    %v2290 = vpop.f32.mrf.mxu0
    %v2291 = vadd.f32 %v2222, %v2290
    %2292 = vdwg.mxu0
    %v2293 = vand.u32 %v200, 4294901760
    %2294 = vmatpush.msra.mxu0 %v2293
    %v2295 = vand.u32 %v198, 4294901760
    %2296 = vmatpush.msra.mxu0 %v2295
    %v2297 = vand.u32 %v196, 4294901760
    %2298 = vmatpush.msra.mxu0 %v2297
    %v2299 = vand.u32 %v194, 4294901760
    %2300 = vmatpush.msra.mxu0 %v2299
    %v2301 = vand.u32 %v192, 4294901760
    %2302 = vmatpush.msra.mxu0 %v2301
    %v2303 = vand.u32 %v190, 4294901760
    %2304 = vmatpush.msra.mxu0 %v2303
    %v2305 = vand.u32 %v188, 4294901760
    %2306 = vmatpush.msra.mxu0 %v2305
    %v2307 = vand.u32 %v186, 4294901760
    %2308 = vmatpush.msra.mxu0 %v2307
    %v2309 = vand.u32 %v184, 4294901760
    %2310 = vmatpush.msra.mxu0 %v2309
    %v2311 = vand.u32 %v182, 4294901760
    %2312 = vmatpush.msra.mxu0 %v2311
    %v2313 = vand.u32 %v180, 4294901760
    %2314 = vmatpush.msra.mxu0 %v2313
    %v2315 = vand.u32 %v178, 4294901760
    %2316 = vmatpush.msra.mxu0 %v2315
    %v2317 = vand.u32 %v176, 4294901760
    %2318 = vmatpush.msra.mxu0 %v2317
    %v2319 = vand.u32 %v174, 4294901760
    %2320 = vmatpush.msra.mxu0 %v2319
    %v2321 = vand.u32 %v172, 4294901760
    %2322 = vmatpush.msra.mxu0 %v2321
    %v2323 = vand.u32 %v170, 4294901760
    %2324 = vmatpush.msra.mxu0 %v2323
    %v2325 = vand.u32 %v1645, 4294901760
    %2326 = vmatmul.f32.gmra.mxu0 %v2325
    %v2327 = vpop.f32.mrf.mxu0
    %v2328 = vadd.f32 %v2291, %v2327
    %2329 = vdwg.mxu0
    %v2330 = vand.u32 %v169, 4294901760
    %2331 = vmatpush.msra.mxu0 %v2330
    %v2332 = vand.u32 %v167, 4294901760
    %2333 = vmatpush.msra.mxu0 %v2332
    %v2334 = vand.u32 %v165, 4294901760
    %2335 = vmatpush.msra.mxu0 %v2334
    %v2336 = vand.u32 %v163, 4294901760
    %2337 = vmatpush.msra.mxu0 %v2336
    %v2338 = vand.u32 %v161, 4294901760
    %2339 = vmatpush.msra.mxu0 %v2338
    %v2340 = vand.u32 %v159, 4294901760
    %2341 = vmatpush.msra.mxu0 %v2340
    %v2342 = vand.u32 %v157, 4294901760
    %2343 = vmatpush.msra.mxu0 %v2342
    %v2344 = vand.u32 %v155, 4294901760
    %2345 = vmatpush.msra.mxu0 %v2344
    %v2346 = vand.u32 %v153, 4294901760
    %2347 = vmatpush.msra.mxu0 %v2346
    %v2348 = vand.u32 %v151, 4294901760
    %2349 = vmatpush.msra.mxu0 %v2348
    %v2350 = vand.u32 %v149, 4294901760
    %2351 = vmatpush.msra.mxu0 %v2350
    %v2352 = vand.u32 %v147, 4294901760
    %2353 = vmatpush.msra.mxu0 %v2352
    %v2354 = vand.u32 %v145, 4294901760
    %2355 = vmatpush.msra.mxu0 %v2354
    %v2356 = vand.u32 %v143, 4294901760
    %2357 = vmatpush.msra.mxu0 %v2356
    %v2358 = vand.u32 %v141, 4294901760
    %2359 = vmatpush.msra.mxu0 %v2358
    %v2360 = vand.u32 %v139, 4294901760
    %2361 = vmatpush.msra.mxu0 %v2360
    %v2362 = vand.u32 %v1644, 4294901760
    %v2363 = vsub.f32 %v1644, %v2362
    %v2364 = vand.u32 %v2363, 4294901760
    %v2365 = vsub.f32 %v2363, %v2364
    %v2366 = vand.u32 %v2365, 4294901760
    %2367 = vmatmul.f32.gmra.mxu0 %v2366
    %v2368 = vpop.f32.mrf.mxu0
    %v2369 = vadd.f32 %v1638, %v2368
    %2370 = vdwg.mxu0
    %v2371 = vand.u32 %v169, 4294901760
    %v2372 = vsub.f32 %v169, %v2371
    %v2373 = vand.u32 %v2372, 4294901760
    %v2374 = vsub.f32 %v2372, %v2373
    %v2375 = vand.u32 %v2374, 4294901760
    %2376 = vmatpush.msra.mxu0 %v2375
    %v2377 = vand.u32 %v167, 4294901760
    %v2378 = vsub.f32 %v167, %v2377
    %v2379 = vand.u32 %v2378, 4294901760
    %v2380 = vsub.f32 %v2378, %v2379
    %v2381 = vand.u32 %v2380, 4294901760
    %2382 = vmatpush.msra.mxu0 %v2381
    %v2383 = vand.u32 %v165, 4294901760
    %v2384 = vsub.f32 %v165, %v2383
    %v2385 = vand.u32 %v2384, 4294901760
    %v2386 = vsub.f32 %v2384, %v2385
    %v2387 = vand.u32 %v2386, 4294901760
    %2388 = vmatpush.msra.mxu0 %v2387
    %v2389 = vand.u32 %v163, 4294901760
    %v2390 = vsub.f32 %v163, %v2389
    %v2391 = vand.u32 %v2390, 4294901760
    %v2392 = vsub.f32 %v2390, %v2391
    %v2393 = vand.u32 %v2392, 4294901760
    %2394 = vmatpush.msra.mxu0 %v2393
    %v2395 = vand.u32 %v161, 4294901760
    %v2396 = vsub.f32 %v161, %v2395
    %v2397 = vand.u32 %v2396, 4294901760
    %v2398 = vsub.f32 %v2396, %v2397
    %v2399 = vand.u32 %v2398, 4294901760
    %2400 = vmatpush.msra.mxu0 %v2399
    %v2401 = vand.u32 %v159, 4294901760
    %v2402 = vsub.f32 %v159, %v2401
    %v2403 = vand.u32 %v2402, 4294901760
    %v2404 = vsub.f32 %v2402, %v2403
    %v2405 = vand.u32 %v2404, 4294901760
    %2406 = vmatpush.msra.mxu0 %v2405
    %v2407 = vand.u32 %v157, 4294901760
    %v2408 = vsub.f32 %v157, %v2407
    %v2409 = vand.u32 %v2408, 4294901760
    %v2410 = vsub.f32 %v2408, %v2409
    %v2411 = vand.u32 %v2410, 4294901760
    %2412 = vmatpush.msra.mxu0 %v2411
    %v2413 = vand.u32 %v155, 4294901760
    %v2414 = vsub.f32 %v155, %v2413
    %v2415 = vand.u32 %v2414, 4294901760
    %v2416 = vsub.f32 %v2414, %v2415
    %v2417 = vand.u32 %v2416, 4294901760
    %2418 = vmatpush.msra.mxu0 %v2417
    %v2419 = vand.u32 %v153, 4294901760
    %v2420 = vsub.f32 %v153, %v2419
    %v2421 = vand.u32 %v2420, 4294901760
    %v2422 = vsub.f32 %v2420, %v2421
    %v2423 = vand.u32 %v2422, 4294901760
    %2424 = vmatpush.msra.mxu0 %v2423
    %v2425 = vand.u32 %v151, 4294901760
    %v2426 = vsub.f32 %v151, %v2425
    %v2427 = vand.u32 %v2426, 4294901760
    %v2428 = vsub.f32 %v2426, %v2427
    %v2429 = vand.u32 %v2428, 4294901760
    %2430 = vmatpush.msra.mxu0 %v2429
    %v2431 = vand.u32 %v149, 4294901760
    %v2432 = vsub.f32 %v149, %v2431
    %v2433 = vand.u32 %v2432, 4294901760
    %v2434 = vsub.f32 %v2432, %v2433
    %v2435 = vand.u32 %v2434, 4294901760
    %2436 = vmatpush.msra.mxu0 %v2435
    %v2437 = vand.u32 %v147, 4294901760
    %v2438 = vsub.f32 %v147, %v2437
    %v2439 = vand.u32 %v2438, 4294901760
    %v2440 = vsub.f32 %v2438, %v2439
    %v2441 = vand.u32 %v2440, 4294901760
    %2442 = vmatpush.msra.mxu0 %v2441
    %v2443 = vand.u32 %v145, 4294901760
    %v2444 = vsub.f32 %v145, %v2443
    %v2445 = vand.u32 %v2444, 4294901760
    %v2446 = vsub.f32 %v2444, %v2445
    %v2447 = vand.u32 %v2446, 4294901760
    %2448 = vmatpush.msra.mxu0 %v2447
    %v2449 = vand.u32 %v143, 4294901760
    %v2450 = vsub.f32 %v143, %v2449
    %v2451 = vand.u32 %v2450, 4294901760
    %v2452 = vsub.f32 %v2450, %v2451
    %v2453 = vand.u32 %v2452, 4294901760
    %2454 = vmatpush.msra.mxu0 %v2453
    %v2455 = vand.u32 %v141, 4294901760
    %v2456 = vsub.f32 %v141, %v2455
    %v2457 = vand.u32 %v2456, 4294901760
    %v2458 = vsub.f32 %v2456, %v2457
    %v2459 = vand.u32 %v2458, 4294901760
    %2460 = vmatpush.msra.mxu0 %v2459
    %v2461 = vand.u32 %v139, 4294901760
    %v2462 = vsub.f32 %v139, %v2461
    %v2463 = vand.u32 %v2462, 4294901760
    %v2464 = vsub.f32 %v2462, %v2463
    %v2465 = vand.u32 %v2464, 4294901760
    %2466 = vmatpush.msra.mxu0 %v2465
    %v2467 = vand.u32 %v1644, 4294901760
    %2468 = vmatmul.f32.gmra.mxu0 %v2467
    %v2469 = vpop.f32.mrf.mxu0
    %v2470 = vadd.f32 %v2369, %v2469
    %2471 = vdwg.mxu0
    %v2472 = vand.u32 %v169, 4294901760
    %v2473 = vsub.f32 %v169, %v2472
    %2474 = vmatpush.msra.mxu0 %v2473
    %v2475 = vand.u32 %v167, 4294901760
    %v2476 = vsub.f32 %v167, %v2475
    %2477 = vmatpush.msra.mxu0 %v2476
    %v2478 = vand.u32 %v165, 4294901760
    %v2479 = vsub.f32 %v165, %v2478
    %2480 = vmatpush.msra.mxu0 %v2479
    %v2481 = vand.u32 %v163, 4294901760
    %v2482 = vsub.f32 %v163, %v2481
    %2483 = vmatpush.msra.mxu0 %v2482
    %v2484 = vand.u32 %v161, 4294901760
    %v2485 = vsub.f32 %v161, %v2484
    %2486 = vmatpush.msra.mxu0 %v2485
    %v2487 = vand.u32 %v159, 4294901760
    %v2488 = vsub.f32 %v159, %v2487
    %2489 = vmatpush.msra.mxu0 %v2488
    %v2490 = vand.u32 %v157, 4294901760
    %v2491 = vsub.f32 %v157, %v2490
    %2492 = vmatpush.msra.mxu0 %v2491
    %v2493 = vand.u32 %v155, 4294901760
    %v2494 = vsub.f32 %v155, %v2493
    %2495 = vmatpush.msra.mxu0 %v2494
    %v2496 = vand.u32 %v153, 4294901760
    %v2497 = vsub.f32 %v153, %v2496
    %2498 = vmatpush.msra.mxu0 %v2497
    %v2499 = vand.u32 %v151, 4294901760
    %v2500 = vsub.f32 %v151, %v2499
    %2501 = vmatpush.msra.mxu0 %v2500
    %v2502 = vand.u32 %v149, 4294901760
    %v2503 = vsub.f32 %v149, %v2502
    %2504 = vmatpush.msra.mxu0 %v2503
    %v2505 = vand.u32 %v147, 4294901760
    %v2506 = vsub.f32 %v147, %v2505
    %2507 = vmatpush.msra.mxu0 %v2506
    %v2508 = vand.u32 %v145, 4294901760
    %v2509 = vsub.f32 %v145, %v2508
    %2510 = vmatpush.msra.mxu0 %v2509
    %v2511 = vand.u32 %v143, 4294901760
    %v2512 = vsub.f32 %v143, %v2511
    %2513 = vmatpush.msra.mxu0 %v2512
    %v2514 = vand.u32 %v141, 4294901760
    %v2515 = vsub.f32 %v141, %v2514
    %2516 = vmatpush.msra.mxu0 %v2515
    %v2517 = vand.u32 %v139, 4294901760
    %v2518 = vsub.f32 %v139, %v2517
    %2519 = vmatpush.msra.mxu0 %v2518
    %v2520 = vand.u32 %v1644, 4294901760
    %v2521 = vsub.f32 %v1644, %v2520
    %2522 = vmatmul.f32.gmra.mxu0 %v2521
    %v2523 = vpop.f32.mrf.mxu0
    %v2524 = vadd.f32 %v2470, %v2523
    %2525 = vdwg.mxu0
    %v2526 = vand.u32 %v169, 4294901760
    %2527 = vmatpush.msra.mxu0 %v2526
    %v2528 = vand.u32 %v167, 4294901760
    %2529 = vmatpush.msra.mxu0 %v2528
    %v2530 = vand.u32 %v165, 4294901760
    %2531 = vmatpush.msra.mxu0 %v2530
    %v2532 = vand.u32 %v163, 4294901760
    %2533 = vmatpush.msra.mxu0 %v2532
    %v2534 = vand.u32 %v161, 4294901760
    %2535 = vmatpush.msra.mxu0 %v2534
    %v2536 = vand.u32 %v159, 4294901760
    %2537 = vmatpush.msra.mxu0 %v2536
    %v2538 = vand.u32 %v157, 4294901760
    %2539 = vmatpush.msra.mxu0 %v2538
    %v2540 = vand.u32 %v155, 4294901760
    %2541 = vmatpush.msra.mxu0 %v2540
    %v2542 = vand.u32 %v153, 4294901760
    %2543 = vmatpush.msra.mxu0 %v2542
    %v2544 = vand.u32 %v151, 4294901760
    %2545 = vmatpush.msra.mxu0 %v2544
    %v2546 = vand.u32 %v149, 4294901760
    %2547 = vmatpush.msra.mxu0 %v2546
    %v2548 = vand.u32 %v147, 4294901760
    %2549 = vmatpush.msra.mxu0 %v2548
    %v2550 = vand.u32 %v145, 4294901760
    %2551 = vmatpush.msra.mxu0 %v2550
    %v2552 = vand.u32 %v143, 4294901760
    %2553 = vmatpush.msra.mxu0 %v2552
    %v2554 = vand.u32 %v141, 4294901760
    %2555 = vmatpush.msra.mxu0 %v2554
    %v2556 = vand.u32 %v139, 4294901760
    %2557 = vmatpush.msra.mxu0 %v2556
    %v2558 = vand.u32 %v1644, 4294901760
    %v2559 = vsub.f32 %v1644, %v2558
    %v2560 = vand.u32 %v2559, 4294901760
    %2561 = vmatmul.f32.gmra.mxu0 %v2560
    %v2562 = vpop.f32.mrf.mxu0
    %v2563 = vadd.f32 %v2524, %v2562
    %2564 = vdwg.mxu0
    %v2565 = vand.u32 %v169, 4294901760
    %v2566 = vsub.f32 %v169, %v2565
    %v2567 = vand.u32 %v2566, 4294901760
    %2568 = vmatpush.msra.mxu0 %v2567
    %v2569 = vand.u32 %v167, 4294901760
    %v2570 = vsub.f32 %v167, %v2569
    %v2571 = vand.u32 %v2570, 4294901760
    %2572 = vmatpush.msra.mxu0 %v2571
    %v2573 = vand.u32 %v165, 4294901760
    %v2574 = vsub.f32 %v165, %v2573
    %v2575 = vand.u32 %v2574, 4294901760
    %2576 = vmatpush.msra.mxu0 %v2575
    %v2577 = vand.u32 %v163, 4294901760
    %v2578 = vsub.f32 %v163, %v2577
    %v2579 = vand.u32 %v2578, 4294901760
    %2580 = vmatpush.msra.mxu0 %v2579
    %v2581 = vand.u32 %v161, 4294901760
    %v2582 = vsub.f32 %v161, %v2581
    %v2583 = vand.u32 %v2582, 4294901760
    %2584 = vmatpush.msra.mxu0 %v2583
    %v2585 = vand.u32 %v159, 4294901760
    %v2586 = vsub.f32 %v159, %v2585
    %v2587 = vand.u32 %v2586, 4294901760
    %2588 = vmatpush.msra.mxu0 %v2587
    %v2589 = vand.u32 %v157, 4294901760
    %v2590 = vsub.f32 %v157, %v2589
    %v2591 = vand.u32 %v2590, 4294901760
    %2592 = vmatpush.msra.mxu0 %v2591
    %v2593 = vand.u32 %v155, 4294901760
    %v2594 = vsub.f32 %v155, %v2593
    %v2595 = vand.u32 %v2594, 4294901760
    %2596 = vmatpush.msra.mxu0 %v2595
    %v2597 = vand.u32 %v153, 4294901760
    %v2598 = vsub.f32 %v153, %v2597
    %v2599 = vand.u32 %v2598, 4294901760
    %2600 = vmatpush.msra.mxu0 %v2599
    %v2601 = vand.u32 %v151, 4294901760
    %v2602 = vsub.f32 %v151, %v2601
    %v2603 = vand.u32 %v2602, 4294901760
    %2604 = vmatpush.msra.mxu0 %v2603
    %v2605 = vand.u32 %v149, 4294901760
    %v2606 = vsub.f32 %v149, %v2605
    %v2607 = vand.u32 %v2606, 4294901760
    %2608 = vmatpush.msra.mxu0 %v2607
    %v2609 = vand.u32 %v147, 4294901760
    %v2610 = vsub.f32 %v147, %v2609
    %v2611 = vand.u32 %v2610, 4294901760
    %2612 = vmatpush.msra.mxu0 %v2611
    %v2613 = vand.u32 %v145, 4294901760
    %v2614 = vsub.f32 %v145, %v2613
    %v2615 = vand.u32 %v2614, 4294901760
    %2616 = vmatpush.msra.mxu0 %v2615
    %v2617 = vand.u32 %v143, 4294901760
    %v2618 = vsub.f32 %v143, %v2617
    %v2619 = vand.u32 %v2618, 4294901760
    %2620 = vmatpush.msra.mxu0 %v2619
    %v2621 = vand.u32 %v141, 4294901760
    %v2622 = vsub.f32 %v141, %v2621
    %v2623 = vand.u32 %v2622, 4294901760
    %2624 = vmatpush.msra.mxu0 %v2623
    %v2625 = vand.u32 %v139, 4294901760
    %v2626 = vsub.f32 %v139, %v2625
    %v2627 = vand.u32 %v2626, 4294901760
    %2628 = vmatpush.msra.mxu0 %v2627
    %v2629 = vand.u32 %v1644, 4294901760
    %2630 = vmatmul.f32.gmra.mxu0 %v2629
    %v2631 = vpop.f32.mrf.mxu0
    %v2632 = vadd.f32 %v2563, %v2631
    %2633 = vdwg.mxu0
    %v2634 = vand.u32 %v169, 4294901760
    %2635 = vmatpush.msra.mxu0 %v2634
    %v2636 = vand.u32 %v167, 4294901760
    %2637 = vmatpush.msra.mxu0 %v2636
    %v2638 = vand.u32 %v165, 4294901760
    %2639 = vmatpush.msra.mxu0 %v2638
    %v2640 = vand.u32 %v163, 4294901760
    %2641 = vmatpush.msra.mxu0 %v2640
    %v2642 = vand.u32 %v161, 4294901760
    %2643 = vmatpush.msra.mxu0 %v2642
    %v2644 = vand.u32 %v159, 4294901760
    %2645 = vmatpush.msra.mxu0 %v2644
    %v2646 = vand.u32 %v157, 4294901760
    %2647 = vmatpush.msra.mxu0 %v2646
    %v2648 = vand.u32 %v155, 4294901760
    %2649 = vmatpush.msra.mxu0 %v2648
    %v2650 = vand.u32 %v153, 4294901760
    %2651 = vmatpush.msra.mxu0 %v2650
    %v2652 = vand.u32 %v151, 4294901760
    %2653 = vmatpush.msra.mxu0 %v2652
    %v2654 = vand.u32 %v149, 4294901760
    %2655 = vmatpush.msra.mxu0 %v2654
    %v2656 = vand.u32 %v147, 4294901760
    %2657 = vmatpush.msra.mxu0 %v2656
    %v2658 = vand.u32 %v145, 4294901760
    %2659 = vmatpush.msra.mxu0 %v2658
    %v2660 = vand.u32 %v143, 4294901760
    %2661 = vmatpush.msra.mxu0 %v2660
    %v2662 = vand.u32 %v141, 4294901760
    %2663 = vmatpush.msra.mxu0 %v2662
    %v2664 = vand.u32 %v139, 4294901760
    %2665 = vmatpush.msra.mxu0 %v2664
    %v2666 = vand.u32 %v1644, 4294901760
    %2667 = vmatmul.f32.gmra.mxu0 %v2666
    %v2668 = vpop.f32.mrf.mxu0
    %v2669 = vadd.f32 %v2632, %v2668
    %2670 = vdwg.mxu0
    %v2671 = vand.u32 %v201, 4294901760
    %2672 = vmatpush.msra.mxu0 %v2671
    %v2673 = vand.u32 %v199, 4294901760
    %2674 = vmatpush.msra.mxu0 %v2673
    %v2675 = vand.u32 %v197, 4294901760
    %2676 = vmatpush.msra.mxu0 %v2675
    %v2677 = vand.u32 %v195, 4294901760
    %2678 = vmatpush.msra.mxu0 %v2677
    %v2679 = vand.u32 %v193, 4294901760
    %2680 = vmatpush.msra.mxu0 %v2679
    %v2681 = vand.u32 %v191, 4294901760
    %2682 = vmatpush.msra.mxu0 %v2681
    %v2683 = vand.u32 %v189, 4294901760
    %2684 = vmatpush.msra.mxu0 %v2683
    %v2685 = vand.u32 %v187, 4294901760
    %2686 = vmatpush.msra.mxu0 %v2685
    %v2687 = vand.u32 %v185, 4294901760
    %2688 = vmatpush.msra.mxu0 %v2687
    %v2689 = vand.u32 %v183, 4294901760
    %2690 = vmatpush.msra.mxu0 %v2689
    %v2691 = vand.u32 %v181, 4294901760
    %2692 = vmatpush.msra.mxu0 %v2691
    %v2693 = vand.u32 %v179, 4294901760
    %2694 = vmatpush.msra.mxu0 %v2693
    %v2695 = vand.u32 %v177, 4294901760
    %2696 = vmatpush.msra.mxu0 %v2695
    %v2697 = vand.u32 %v175, 4294901760
    %2698 = vmatpush.msra.mxu0 %v2697
    %v2699 = vand.u32 %v173, 4294901760
    %2700 = vmatpush.msra.mxu0 %v2699
    %v2701 = vand.u32 %v171, 4294901760
    %2702 = vmatpush.msra.mxu0 %v2701
    %v2703 = vand.u32 %v1645, 4294901760
    %v2704 = vsub.f32 %v1645, %v2703
    %v2705 = vand.u32 %v2704, 4294901760
    %v2706 = vsub.f32 %v2704, %v2705
    %v2707 = vand.u32 %v2706, 4294901760
    %2708 = vmatmul.f32.gmra.mxu0 %v2707
    %v2709 = vpop.f32.mrf.mxu0
    %v2710 = vadd.f32 %v2669, %v2709
    %2711 = vdwg.mxu0
    %v2712 = vand.u32 %v201, 4294901760
    %v2713 = vsub.f32 %v201, %v2712
    %v2714 = vand.u32 %v2713, 4294901760
    %v2715 = vsub.f32 %v2713, %v2714
    %v2716 = vand.u32 %v2715, 4294901760
    %2717 = vmatpush.msra.mxu0 %v2716
    %v2718 = vand.u32 %v199, 4294901760
    %v2719 = vsub.f32 %v199, %v2718
    %v2720 = vand.u32 %v2719, 4294901760
    %v2721 = vsub.f32 %v2719, %v2720
    %v2722 = vand.u32 %v2721, 4294901760
    %2723 = vmatpush.msra.mxu0 %v2722
    %v2724 = vand.u32 %v197, 4294901760
    %v2725 = vsub.f32 %v197, %v2724
    %v2726 = vand.u32 %v2725, 4294901760
    %v2727 = vsub.f32 %v2725, %v2726
    %v2728 = vand.u32 %v2727, 4294901760
    %2729 = vmatpush.msra.mxu0 %v2728
    %v2730 = vand.u32 %v195, 4294901760
    %v2731 = vsub.f32 %v195, %v2730
    %v2732 = vand.u32 %v2731, 4294901760
    %v2733 = vsub.f32 %v2731, %v2732
    %v2734 = vand.u32 %v2733, 4294901760
    %2735 = vmatpush.msra.mxu0 %v2734
    %v2736 = vand.u32 %v193, 4294901760
    %v2737 = vsub.f32 %v193, %v2736
    %v2738 = vand.u32 %v2737, 4294901760
    %v2739 = vsub.f32 %v2737, %v2738
    %v2740 = vand.u32 %v2739, 4294901760
    %2741 = vmatpush.msra.mxu0 %v2740
    %v2742 = vand.u32 %v191, 4294901760
    %v2743 = vsub.f32 %v191, %v2742
    %v2744 = vand.u32 %v2743, 4294901760
    %v2745 = vsub.f32 %v2743, %v2744
    %v2746 = vand.u32 %v2745, 4294901760
    %2747 = vmatpush.msra.mxu0 %v2746
    %v2748 = vand.u32 %v189, 4294901760
    %v2749 = vsub.f32 %v189, %v2748
    %v2750 = vand.u32 %v2749, 4294901760
    %v2751 = vsub.f32 %v2749, %v2750
    %v2752 = vand.u32 %v2751, 4294901760
    %2753 = vmatpush.msra.mxu0 %v2752
    %v2754 = vand.u32 %v187, 4294901760
    %v2755 = vsub.f32 %v187, %v2754
    %v2756 = vand.u32 %v2755, 4294901760
    %v2757 = vsub.f32 %v2755, %v2756
    %v2758 = vand.u32 %v2757, 4294901760
    %2759 = vmatpush.msra.mxu0 %v2758
    %v2760 = vand.u32 %v185, 4294901760
    %v2761 = vsub.f32 %v185, %v2760
    %v2762 = vand.u32 %v2761, 4294901760
    %v2763 = vsub.f32 %v2761, %v2762
    %v2764 = vand.u32 %v2763, 4294901760
    %2765 = vmatpush.msra.mxu0 %v2764
    %v2766 = vand.u32 %v183, 4294901760
    %v2767 = vsub.f32 %v183, %v2766
    %v2768 = vand.u32 %v2767, 4294901760
    %v2769 = vsub.f32 %v2767, %v2768
    %v2770 = vand.u32 %v2769, 4294901760
    %2771 = vmatpush.msra.mxu0 %v2770
    %v2772 = vand.u32 %v181, 4294901760
    %v2773 = vsub.f32 %v181, %v2772
    %v2774 = vand.u32 %v2773, 4294901760
    %v2775 = vsub.f32 %v2773, %v2774
    %v2776 = vand.u32 %v2775, 4294901760
    %2777 = vmatpush.msra.mxu0 %v2776
    %v2778 = vand.u32 %v179, 4294901760
    %v2779 = vsub.f32 %v179, %v2778
    %v2780 = vand.u32 %v2779, 4294901760
    %v2781 = vsub.f32 %v2779, %v2780
    %v2782 = vand.u32 %v2781, 4294901760
    %2783 = vmatpush.msra.mxu0 %v2782
    %v2784 = vand.u32 %v177, 4294901760
    %v2785 = vsub.f32 %v177, %v2784
    %v2786 = vand.u32 %v2785, 4294901760
    %v2787 = vsub.f32 %v2785, %v2786
    %v2788 = vand.u32 %v2787, 4294901760
    %2789 = vmatpush.msra.mxu0 %v2788
    %v2790 = vand.u32 %v175, 4294901760
    %v2791 = vsub.f32 %v175, %v2790
    %v2792 = vand.u32 %v2791, 4294901760
    %v2793 = vsub.f32 %v2791, %v2792
    %v2794 = vand.u32 %v2793, 4294901760
    %2795 = vmatpush.msra.mxu0 %v2794
    %v2796 = vand.u32 %v173, 4294901760
    %v2797 = vsub.f32 %v173, %v2796
    %v2798 = vand.u32 %v2797, 4294901760
    %v2799 = vsub.f32 %v2797, %v2798
    %v2800 = vand.u32 %v2799, 4294901760
    %2801 = vmatpush.msra.mxu0 %v2800
    %v2802 = vand.u32 %v171, 4294901760
    %v2803 = vsub.f32 %v171, %v2802
    %v2804 = vand.u32 %v2803, 4294901760
    %v2805 = vsub.f32 %v2803, %v2804
    %v2806 = vand.u32 %v2805, 4294901760
    %2807 = vmatpush.msra.mxu0 %v2806
    %v2808 = vand.u32 %v1645, 4294901760
    %2809 = vmatmul.f32.gmra.mxu0 %v2808
    %v2810 = vpop.f32.mrf.mxu0
    %v2811 = vadd.f32 %v2710, %v2810
    %2812 = vdwg.mxu0
    %v2813 = vand.u32 %v201, 4294901760
    %v2814 = vsub.f32 %v201, %v2813
    %2815 = vmatpush.msra.mxu0 %v2814
    %v2816 = vand.u32 %v199, 4294901760
    %v2817 = vsub.f32 %v199, %v2816
    %2818 = vmatpush.msra.mxu0 %v2817
    %v2819 = vand.u32 %v197, 4294901760
    %v2820 = vsub.f32 %v197, %v2819
    %2821 = vmatpush.msra.mxu0 %v2820
    %v2822 = vand.u32 %v195, 4294901760
    %v2823 = vsub.f32 %v195, %v2822
    %2824 = vmatpush.msra.mxu0 %v2823
    %v2825 = vand.u32 %v193, 4294901760
    %v2826 = vsub.f32 %v193, %v2825
    %2827 = vmatpush.msra.mxu0 %v2826
    %v2828 = vand.u32 %v191, 4294901760
    %v2829 = vsub.f32 %v191, %v2828
    %2830 = vmatpush.msra.mxu0 %v2829
    %v2831 = vand.u32 %v189, 4294901760
    %v2832 = vsub.f32 %v189, %v2831
    %2833 = vmatpush.msra.mxu0 %v2832
    %v2834 = vand.u32 %v187, 4294901760
    %v2835 = vsub.f32 %v187, %v2834
    %2836 = vmatpush.msra.mxu0 %v2835
    %v2837 = vand.u32 %v185, 4294901760
    %v2838 = vsub.f32 %v185, %v2837
    %2839 = vmatpush.msra.mxu0 %v2838
    %v2840 = vand.u32 %v183, 4294901760
    %v2841 = vsub.f32 %v183, %v2840
    %2842 = vmatpush.msra.mxu0 %v2841
    %v2843 = vand.u32 %v181, 4294901760
    %v2844 = vsub.f32 %v181, %v2843
    %2845 = vmatpush.msra.mxu0 %v2844
    %v2846 = vand.u32 %v179, 4294901760
    %v2847 = vsub.f32 %v179, %v2846
    %2848 = vmatpush.msra.mxu0 %v2847
    %v2849 = vand.u32 %v177, 4294901760
    %v2850 = vsub.f32 %v177, %v2849
    %2851 = vmatpush.msra.mxu0 %v2850
    %v2852 = vand.u32 %v175, 4294901760
    %v2853 = vsub.f32 %v175, %v2852
    %2854 = vmatpush.msra.mxu0 %v2853
    %v2855 = vand.u32 %v173, 4294901760
    %v2856 = vsub.f32 %v173, %v2855
    %2857 = vmatpush.msra.mxu0 %v2856
    %v2858 = vand.u32 %v171, 4294901760
    %v2859 = vsub.f32 %v171, %v2858
    %2860 = vmatpush.msra.mxu0 %v2859
    %v2861 = vand.u32 %v1645, 4294901760
    %v2862 = vsub.f32 %v1645, %v2861
    %2863 = vmatmul.f32.gmra.mxu0 %v2862
    %v2864 = vpop.f32.mrf.mxu0
    %v2865 = vadd.f32 %v2811, %v2864
    %2866 = vdwg.mxu0
    %v2867 = vand.u32 %v201, 4294901760
    %2868 = vmatpush.msra.mxu0 %v2867
    %v2869 = vand.u32 %v199, 4294901760
    %2870 = vmatpush.msra.mxu0 %v2869
    %v2871 = vand.u32 %v197, 4294901760
    %2872 = vmatpush.msra.mxu0 %v2871
    %v2873 = vand.u32 %v195, 4294901760
    %2874 = vmatpush.msra.mxu0 %v2873
    %v2875 = vand.u32 %v193, 4294901760
    %2876 = vmatpush.msra.mxu0 %v2875
    %v2877 = vand.u32 %v191, 4294901760
    %2878 = vmatpush.msra.mxu0 %v2877
    %v2879 = vand.u32 %v189, 4294901760
    %2880 = vmatpush.msra.mxu0 %v2879
    %v2881 = vand.u32 %v187, 4294901760
    %2882 = vmatpush.msra.mxu0 %v2881
    %v2883 = vand.u32 %v185, 4294901760
    %2884 = vmatpush.msra.mxu0 %v2883
    %v2885 = vand.u32 %v183, 4294901760
    %2886 = vmatpush.msra.mxu0 %v2885
    %v2887 = vand.u32 %v181, 4294901760
    %2888 = vmatpush.msra.mxu0 %v2887
    %v2889 = vand.u32 %v179, 4294901760
    %2890 = vmatpush.msra.mxu0 %v2889
    %v2891 = vand.u32 %v177, 4294901760
    %2892 = vmatpush.msra.mxu0 %v2891
    %v2893 = vand.u32 %v175, 4294901760
    %2894 = vmatpush.msra.mxu0 %v2893
    %v2895 = vand.u32 %v173, 4294901760
    %2896 = vmatpush.msra.mxu0 %v2895
    %v2897 = vand.u32 %v171, 4294901760
    %2898 = vmatpush.msra.mxu0 %v2897
    %v2899 = vand.u32 %v1645, 4294901760
    %v2900 = vsub.f32 %v1645, %v2899
    %v2901 = vand.u32 %v2900, 4294901760
    %2902 = vmatmul.f32.gmra.mxu0 %v2901
    %v2903 = vpop.f32.mrf.mxu0
    %v2904 = vadd.f32 %v2865, %v2903
    %2905 = vdwg.mxu0
    %v2906 = vand.u32 %v201, 4294901760
    %v2907 = vsub.f32 %v201, %v2906
    %v2908 = vand.u32 %v2907, 4294901760
    %2909 = vmatpush.msra.mxu0 %v2908
    %v2910 = vand.u32 %v199, 4294901760
    %v2911 = vsub.f32 %v199, %v2910
    %v2912 = vand.u32 %v2911, 4294901760
    %2913 = vmatpush.msra.mxu0 %v2912
    %v2914 = vand.u32 %v197, 4294901760
    %v2915 = vsub.f32 %v197, %v2914
    %v2916 = vand.u32 %v2915, 4294901760
    %2917 = vmatpush.msra.mxu0 %v2916
    %v2918 = vand.u32 %v195, 4294901760
    %v2919 = vsub.f32 %v195, %v2918
    %v2920 = vand.u32 %v2919, 4294901760
    %2921 = vmatpush.msra.mxu0 %v2920
    %v2922 = vand.u32 %v193, 4294901760
    %v2923 = vsub.f32 %v193, %v2922
    %v2924 = vand.u32 %v2923, 4294901760
    %2925 = vmatpush.msra.mxu0 %v2924
    %v2926 = vand.u32 %v191, 4294901760
    %v2927 = vsub.f32 %v191, %v2926
    %v2928 = vand.u32 %v2927, 4294901760
    %2929 = vmatpush.msra.mxu0 %v2928
    %v2930 = vand.u32 %v189, 4294901760
    %v2931 = vsub.f32 %v189, %v2930
    %v2932 = vand.u32 %v2931, 4294901760
    %2933 = vmatpush.msra.mxu0 %v2932
    %v2934 = vand.u32 %v187, 4294901760
    %v2935 = vsub.f32 %v187, %v2934
    %v2936 = vand.u32 %v2935, 4294901760
    %2937 = vmatpush.msra.mxu0 %v2936
    %v2938 = vand.u32 %v185, 4294901760
    %v2939 = vsub.f32 %v185, %v2938
    %v2940 = vand.u32 %v2939, 4294901760
    %2941 = vmatpush.msra.mxu0 %v2940
    %v2942 = vand.u32 %v183, 4294901760
    %v2943 = vsub.f32 %v183, %v2942
    %v2944 = vand.u32 %v2943, 4294901760
    %2945 = vmatpush.msra.mxu0 %v2944
    %v2946 = vand.u32 %v181, 4294901760
    %v2947 = vsub.f32 %v181, %v2946
    %v2948 = vand.u32 %v2947, 4294901760
    %2949 = vmatpush.msra.mxu0 %v2948
    %v2950 = vand.u32 %v179, 4294901760
    %v2951 = vsub.f32 %v179, %v2950
    %v2952 = vand.u32 %v2951, 4294901760
    %2953 = vmatpush.msra.mxu0 %v2952
    %v2954 = vand.u32 %v177, 4294901760
    %v2955 = vsub.f32 %v177, %v2954
    %v2956 = vand.u32 %v2955, 4294901760
    %2957 = vmatpush.msra.mxu0 %v2956
    %v2958 = vand.u32 %v175, 4294901760
    %v2959 = vsub.f32 %v175, %v2958
    %v2960 = vand.u32 %v2959, 4294901760
    %2961 = vmatpush.msra.mxu0 %v2960
    %v2962 = vand.u32 %v173, 4294901760
    %v2963 = vsub.f32 %v173, %v2962
    %v2964 = vand.u32 %v2963, 4294901760
    %2965 = vmatpush.msra.mxu0 %v2964
    %v2966 = vand.u32 %v171, 4294901760
    %v2967 = vsub.f32 %v171, %v2966
    %v2968 = vand.u32 %v2967, 4294901760
    %2969 = vmatpush.msra.mxu0 %v2968
    %v2970 = vand.u32 %v1645, 4294901760
    %2971 = vmatmul.f32.gmra.mxu0 %v2970
    %v2972 = vpop.f32.mrf.mxu0
    %v2973 = vadd.f32 %v2904, %v2972
    %2974 = vdwg.mxu0
    %v2975 = vand.u32 %v201, 4294901760
    %2976 = vmatpush.msra.mxu0 %v2975
    %v2977 = vand.u32 %v199, 4294901760
    %2978 = vmatpush.msra.mxu0 %v2977
    %v2979 = vand.u32 %v197, 4294901760
    %2980 = vmatpush.msra.mxu0 %v2979
    %v2981 = vand.u32 %v195, 4294901760
    %2982 = vmatpush.msra.mxu0 %v2981
    %v2983 = vand.u32 %v193, 4294901760
    %2984 = vmatpush.msra.mxu0 %v2983
    %v2985 = vand.u32 %v191, 4294901760
    %2986 = vmatpush.msra.mxu0 %v2985
    %v2987 = vand.u32 %v189, 4294901760
    %2988 = vmatpush.msra.mxu0 %v2987
    %v2989 = vand.u32 %v187, 4294901760
    %2990 = vmatpush.msra.mxu0 %v2989
    %v2991 = vand.u32 %v185, 4294901760
    %2992 = vmatpush.msra.mxu0 %v2991
    %v2993 = vand.u32 %v183, 4294901760
    %2994 = vmatpush.msra.mxu0 %v2993
    %v2995 = vand.u32 %v181, 4294901760
    %2996 = vmatpush.msra.mxu0 %v2995
    %v2997 = vand.u32 %v179, 4294901760
    %2998 = vmatpush.msra.mxu0 %v2997
    %v2999 = vand.u32 %v177, 4294901760
    %3000 = vmatpush.msra.mxu0 %v2999
    %v3001 = vand.u32 %v175, 4294901760
    %3002 = vmatpush.msra.mxu0 %v3001
    %v3003 = vand.u32 %v173, 4294901760
    %3004 = vmatpush.msra.mxu0 %v3003
    %v3005 = vand.u32 %v171, 4294901760
    %3006 = vmatpush.msra.mxu0 %v3005
    %v3007 = vand.u32 %v1645, 4294901760
    %3008 = vmatmul.f32.gmra.mxu0 %v3007
    %v3009 = vpop.f32.mrf.mxu0
    %v3010 = vadd.f32 %v2973, %v3009
    %3011 = vdwg.mxu0
    %v3012 = vxor.u32 %v2328, 2147483648
    %v3013 = vxor.u32 %v3010, 2147483648
    %v3014 = vmul.f32 %v3012, 1.442695
    %v3015 = vpow.pop %v3014
    %v3016 = vmul.f32 %v3013, 1.442695
    %v3017 = vpow.pop %v3016
    %v3018 = vadd.f32 %v3015, 1.0
    %v3019 = vadd.f32 %v3017, 1.0
    %v3020 = vrcp.pop %v3018
    %v3021 = vmul.f32 %v3018, %v3020
    %v3022 = vsub.f32 1.0, %v3021
    %v3023 = vmul.f32 %v3020, %v3022
    %v3024 = vadd.f32 %v3020, %v3023
    %vm3025 = vweird.f32 %v3018
    %vm3026 = vweird.f32 %v3020
    %vm3027 = vmor %vm3025, %vm3026
    %v3028 = vsel %vm3027, %v3020, %v3024
    %v3029 = vand.u32 2147483647, %v3018
    %vm3030 = vcmp.eq.f32.partialorder %v3029, 8.507059e+37
    %v3031 = vand.u32 %v3018, 2147483648
    %v3032 = vor.u32 1.1754944e-38, %v3031
    %v3033 = vsel %vm3030, %v3032, %v3028
    %v3034 = vmul.f32 1.0, %v3033
    %v3035 = vrcp.pop %v3019
    %v3036 = vmul.f32 %v3019, %v3035
    %v3037 = vsub.f32 1.0, %v3036
    %v3038 = vmul.f32 %v3035, %v3037
    %v3039 = vadd.f32 %v3035, %v3038
    %vm3040 = vweird.f32 %v3019
    %vm3041 = vweird.f32 %v3035
    %vm3042 = vmor %vm3040, %vm3041
    %v3043 = vsel %vm3042, %v3035, %v3039
    %v3044 = vand.u32 2147483647, %v3019
    %vm3045 = vcmp.eq.f32.partialorder %v3044, 8.507059e+37
    %v3046 = vand.u32 %v3019, 2147483648
    %v3047 = vor.u32 1.1754944e-38, %v3046
    %v3048 = vsel %vm3045, %v3047, %v3043
    %v3049 = vmul.f32 1.0, %v3048
    %v3052 = vrot.slane %v3049, 7
    %vm3053 = vcmask 1040384
    %v3054 = vsel %vm3053, %v3034, %v3052
    %v3055 = vsel %vm271, %v3034, %v3052
    %v3056 = vrot.slane %v3055, 1
    %v3057 = vperm.slane %v3054, 0
    %v3058 = vperm.slane %v3054, 1
    %v3059 = vperm.slane %v3056, 0
    %v3060 = vperm.slane %v3056, 1
    %v3061 = vrot.slane %v3058, 4
    %v3062 = vrot.slane %v3060, 4
    %v3063 = vsel %vm59, %v3057, %v3061
    %v3064 = vsel %vm59, %v3059, %v3062
    %v3067 = vmul.f32 %v44, %v3063
    %v3068 = vmul.f32 %v45, %v3064
    %3069 = vst [vmem:[#allocation7] sm:$0xff] %v3067
    %3070 = vst [vmem:[#allocation7 + $0x8] sm:$0xff] %v3068
    // Predicated region
    $region18: #{tpu_custom_call.1} parent=1 // pred_check
      _
    $region19: #{tpu_custom_call.1} parent=1 // pred_check_branch
      %3072 = sbr.rel (0) target = $region21
    $region20: #{tpu_custom_call.1} parent=1 // pred_region
      %3074 = vsyncadd [#allocation4], 0
      %s3075 = sshll.u32 [#allocation7], 4
      %s3076 = int_to_ptr.vmem [resolvable:$true] %s3075
      %s3077 = sshll.u32 %s2, 4
      %s3078 = int_to_ptr.hbm [resolvable:$true] %s3077
      %3083 = dma.vmem_to_hbm [thread:$0]  %s3076, 256, %s3078, [#allocation4], 128, 128, 8
    $region21: #{tpu_custom_call.1} parent=1 // pred_fallthru
      _
    // Predicated region
    $region22: #{tpu_custom_call.1} parent=1 // pred_check
      _
    $region23: #{tpu_custom_call.1} parent=1 // pred_check_branch
      %3085 = sbr.rel (0) target = $region25
    $region24: #{tpu_custom_call.1} parent=1 // pred_region
      %3087 = dma.done [#allocation4], 256
    $region25: #{tpu_custom_call.1} parent=1 // pred_fallthru
      _
    %3088 = vsyncpa [#allocation3], 1
    %3089 = vsyncpa [#allocation6], 1
    %3090 = vsyncpa [#allocation4], 1

</llo_original>
